<compile_context>
chip_gen: v7x
topology: tpu7x:2x2x1
jax: 0.10.0
libtpu: 0.0.40
codegen_flags: <defaults>
</compile_context>

<pallas_src>
import jax
import jax.numpy as jnp
from jax.experimental import pallas as pl
from jax.experimental.pallas import tpu as pltpu

INPUT_SIZE = 2
HIDDEN = 32
OUTPUT = 1
NUM_LAYERS = 2
SEQ = 8

H = HIDDEN


def rnn_policy_kernel(xh_ref, p_ref, out_ref, hn_ref):
    # ----- unpack lane-packed parameters (static slices, hoisted off the serial chain) -----
    whh0 = p_ref[0:H, 0 * H:1 * H]                       # (H, H)
    wih1 = p_ref[0:H, 1 * H:2 * H]                       # (H, H)
    whh1 = p_ref[0:H, 2 * H:3 * H]                       # (H, H)
    fc1w = p_ref[0:H, 3 * H:4 * H]                       # (H, H)
    b0 = p_ref[H:H + 1, 2 * H:3 * H]                     # (1, H)
    b1 = p_ref[H:H + 1, 3 * H:4 * H]                     # (1, H)
    fc1b = p_ref[H + 1:H + 2, 0:H]                       # (1, H)
    fc2w_row = p_ref[H + 1:H + 2, H:2 * H]               # (1, H) == fc2_w.T
    fc2b = p_ref[H + 1:H + 2, 2 * H:2 * H + OUTPUT]      # (1, 1)

    # ----- layer-0 input projection on the VPU (K=2 would waste a full MXU pass) -----
    # xproj0[t] = b0 + sum_k x[t, k] * wih0[k, :]  -> (SEQ, H), off the recurrent chain.
    xproj0 = b0
    for k in range(INPUT_SIZE):
        xproj0 = xproj0 + xh_ref[0:SEQ, k:k + 1] * p_ref[H:H + 1, k * H:(k + 1) * H]

    # ----- interleaved recurrences, hidden states kept in vregs -----
    # Layer-1 step t depends only on h0_t and h1_{t-1}; written as one unrolled loop the
    # dataflow lets the scheduler overlap layer-1 step t with layer-0 step t+1.
    h0 = xh_ref[SEQ:SEQ + 1, :]                          # (1, H) initial hidden, layer 0
    h1 = xh_ref[SEQ + 1:SEQ + 2, :]                      # (1, H) initial hidden, layer 1
    rows = []
    for t in range(SEQ):                                 # statically unrolled
        h0 = jnp.tanh(xproj0[t:t + 1, :]
                      + jnp.dot(h0, whh0, preferred_element_type=jnp.float32))
        g1 = jnp.dot(h0, wih1, preferred_element_type=jnp.float32) + b1   # off-chain
        h1 = jnp.tanh(g1 + jnp.dot(h1, whh1, preferred_element_type=jnp.float32))
        rows.append(h1)
    hseq1 = jnp.concatenate(rows, axis=0)                # (SEQ, H), materialized once

    # ----- fc1 -> relu (single (SEQ,H)@(H,H) MXU matmul) -----
    a = jnp.maximum(
        jnp.dot(hseq1, fc1w, preferred_element_type=jnp.float32) + fc1b, 0.0)
    # ----- fc2 (N=1): VPU multiply + lane reduce instead of an MXU pass -----
    # TODO(synk): the (SEQ,1) store is a masked vst; amortize by batching sequences
    # rather than padding the output (an external slice op would cost more than it saves).
    out_ref[...] = jnp.sum(a * fc2w_row, axis=-1, keepdims=True) + fc2b

    # Updated hidden state (the module's self.hidden side effect).
    hn_ref[0:1, :] = h0
    hn_ref[1:2, :] = h1


def pack_params(p):
    """Pack all 11 parameter arrays into one lane-dense (H+8, 4H)=(40,128) f32 slab.

    Call ONCE per parameter set (hoisted out of the per-forward path).
    rows 0:32 : lanes [0:32]=whh0 [32:64]=wih1 [64:96]=whh1 [96:128]=fc1_w
    row 32    : lanes [k*32:(k+1)*32]=wih0 row k (k<INPUT_SIZE), [64:96]=b0, [96:128]=b1
    row 33    : lanes [0:32]=fc1_b, [32:64]=fc2_w.T, [64:64+OUTPUT]=fc2_b
    rows 34:40: zero padding (sublane multiple of 8)
    """
    assert INPUT_SIZE + 2 <= 4, "wih0 rows + b0 + b1 must fit the 4 lane slots of row H"
    P = jnp.zeros((H + 8, 4 * H), jnp.float32)
    P = P.at[0:H, 0 * H:1 * H].set(p["whh0"])
    P = P.at[0:H, 1 * H:2 * H].set(p["wih1"])
    P = P.at[0:H, 2 * H:3 * H].set(p["whh1"])
    P = P.at[0:H, 3 * H:4 * H].set(p["fc1_w"])
    for k in range(INPUT_SIZE):
        P = P.at[H, k * H:(k + 1) * H].set(p["wih0"][k])
    P = P.at[H, 2 * H:3 * H].set(p["b0"][0])
    P = P.at[H, 3 * H:4 * H].set(p["b1"][0])
    P = P.at[H + 1, 0:H].set(p["fc1_b"][0])
    P = P.at[H + 1, H:2 * H].set(p["fc2_w"][:, 0])
    P = P.at[H + 1, 2 * H:2 * H + OUTPUT].set(p["fc2_b"][0])
    return P


@jax.jit
def recurrent_policy_forward(x, h0, packed_params):
    """Returns (out (SEQ, OUTPUT), new_hidden (NUM_LAYERS, HIDDEN))."""
    # One dynamic input slab: x lane-padded to H, with h0 appended -> (SEQ+2, H).
    xh = jnp.concatenate(
        [jnp.pad(x, ((0, 0), (0, HIDDEN - INPUT_SIZE))), h0], axis=0)
    vmem = pl.BlockSpec(memory_space=pltpu.MemorySpace.VMEM)
    return pl.pallas_call(
        rnn_policy_kernel,
        out_shape=(jax.ShapeDtypeStruct((SEQ, OUTPUT), jnp.float32),
                   jax.ShapeDtypeStruct((NUM_LAYERS, HIDDEN), jnp.float32)),
        in_specs=[vmem, vmem],
        out_specs=(vmem, vmem),
    )(xh, packed_params)


def init_params(key):
    """Deterministic synthetic init (PyTorch-style U(-1/sqrt(fan), 1/sqrt(fan)))."""
    ks = jax.random.split(key, 12)

    def u(k, shape, fan):
        bound = 1.0 / jnp.sqrt(fan)
        return jax.random.uniform(k, shape, jnp.float32, -bound, bound)

    # RNN layer 0: weights stored transposed to (in, out); b = b_ih + b_hh.
    wih0 = u(ks[0], (INPUT_SIZE, HIDDEN), HIDDEN)
    whh0 = u(ks[1], (HIDDEN, HIDDEN), HIDDEN)
    b0 = (u(ks[2], (1, HIDDEN), HIDDEN) + u(ks[3], (1, HIDDEN), HIDDEN))
    # RNN layer 1
    wih1 = u(ks[4], (HIDDEN, HIDDEN), HIDDEN)
    whh1 = u(ks[5], (HIDDEN, HIDDEN), HIDDEN)
    b1 = (u(ks[6], (1, HIDDEN), HIDDEN) + u(ks[7], (1, HIDDEN), HIDDEN))
    # fc1: Linear(H, H); fc2: Linear(H, OUTPUT) — stored as (in, out).
    fc1_w = u(ks[8], (HIDDEN, HIDDEN), HIDDEN)
    fc1_b = u(ks[9], (1, HIDDEN), HIDDEN)
    fc2_w = u(ks[10], (HIDDEN, OUTPUT), HIDDEN)
    fc2_b = u(ks[11], (1, OUTPUT), HIDDEN)
    return dict(wih0=wih0, whh0=whh0, b0=b0, wih1=wih1, whh1=whh1, b1=b1,
                fc1_w=fc1_w, fc1_b=fc1_b, fc2_w=fc2_w, fc2_b=fc2_b)


def reference_forward(x, p, h0):
    """Pure-JAX reference mirroring the PyTorch forward pass (and hidden update)."""
    h_l0 = h0[0:1]
    h_l1 = h0[1:2]
    outs = []
    for t in range(x.shape[0]):
        x_t = x[t:t + 1]
        h_l0 = jnp.tanh(x_t @ p["wih0"] + h_l0 @ p["whh0"] + p["b0"])
        h_l1 = jnp.tanh(h_l0 @ p["wih1"] + h_l1 @ p["whh1"] + p["b1"])
        outs.append(h_l1)
    hseq = jnp.concatenate(outs, axis=0)                      # (seq, hidden)
    a = jnp.maximum(hseq @ p["fc1_w"] + p["fc1_b"], 0.0)      # relu(fc1)
    out = a @ p["fc2_w"] + p["fc2_b"]                         # fc2
    hn = jnp.concatenate([h_l0, h_l1], axis=0)
    return out, hn


if __name__ == "__main__":
    key = jax.random.PRNGKey(0)
    k_x, k_p = jax.random.split(key)

    x = jax.random.normal(k_x, (SEQ, INPUT_SIZE), jnp.float32)
    params = init_params(k_p)
    h0 = jnp.zeros((NUM_LAYERS, HIDDEN), jnp.float32)   # module inits hidden to zeros

    packed = jax.block_until_ready(pack_params(params))  # packed once, reused per call

    out, hn = recurrent_policy_forward(x, h0, packed)
    out, hn = jax.block_until_ready((out, hn))

    ref_out, ref_hn = reference_forward(x, params, h0)
    assert out.shape == (SEQ, OUTPUT)
    assert hn.shape == (NUM_LAYERS, HIDDEN)
    assert jnp.allclose(out, ref_out, atol=1e-5, rtol=1e-5), "output mismatch vs reference"
    assert jnp.allclose(hn, ref_hn, atol=1e-5, rtol=1e-5), "hidden mismatch vs reference"
    print("KERNEL_OK")
</pallas_src>

<mosaic_0001>
module attributes {stable_mosaic.version = 11 : i64} {
  func.func @rnn_policy_kernel(%arg0: memref<10x32xf32, #tpu.memory_space<vmem>>, %arg1: memref<40x128xf32, #tpu.memory_space<vmem>>, %arg2: memref<8x1xf32, #tpu.memory_space<vmem>>, %arg3: memref<2x32xf32, #tpu.memory_space<vmem>>) attributes {dimension_semantics = [], scalar_prefetch = 0 : i64, scratch_operands = 0 : i64, tpu.core_type = #tpu.core_type<tc>} {
    %c0 = arith.constant 0 : index
    %c0_0 = arith.constant 0 : index
    %0 = vector.load %arg1[%c0, %c0_0] : memref<40x128xf32, #tpu.memory_space<vmem>>, vector<32x32xf32>
    %c0_1 = arith.constant 0 : index
    %c32 = arith.constant 32 : index
    %1 = vector.load %arg1[%c0_1, %c32] : memref<40x128xf32, #tpu.memory_space<vmem>>, vector<32x32xf32>
    %c0_2 = arith.constant 0 : index
    %c64 = arith.constant 64 : index
    %2 = vector.load %arg1[%c0_2, %c64] : memref<40x128xf32, #tpu.memory_space<vmem>>, vector<32x32xf32>
    %c0_3 = arith.constant 0 : index
    %c96 = arith.constant 96 : index
    %3 = vector.load %arg1[%c0_3, %c96] : memref<40x128xf32, #tpu.memory_space<vmem>>, vector<32x32xf32>
    %c32_4 = arith.constant 32 : index
    %c64_5 = arith.constant 64 : index
    %4 = vector.load %arg1[%c32_4, %c64_5] : memref<40x128xf32, #tpu.memory_space<vmem>>, vector<1x32xf32>
    %c32_6 = arith.constant 32 : index
    %c96_7 = arith.constant 96 : index
    %5 = vector.load %arg1[%c32_6, %c96_7] : memref<40x128xf32, #tpu.memory_space<vmem>>, vector<1x32xf32>
    %c33 = arith.constant 33 : index
    %c0_8 = arith.constant 0 : index
    %6 = vector.load %arg1[%c33, %c0_8] : memref<40x128xf32, #tpu.memory_space<vmem>>, vector<1x32xf32>
    %c33_9 = arith.constant 33 : index
    %c32_10 = arith.constant 32 : index
    %7 = vector.load %arg1[%c33_9, %c32_10] : memref<40x128xf32, #tpu.memory_space<vmem>>, vector<1x32xf32>
    %c33_11 = arith.constant 33 : index
    %c64_12 = arith.constant 64 : index
    %8 = vector.load %arg1[%c33_11, %c64_12] : memref<40x128xf32, #tpu.memory_space<vmem>>, vector<1x1xf32>
    %c0_13 = arith.constant 0 : index
    %c0_14 = arith.constant 0 : index
    %9 = vector.load %arg0[%c0_13, %c0_14] : memref<10x32xf32, #tpu.memory_space<vmem>>, vector<8x1xf32>
    %c32_15 = arith.constant 32 : index
    %c0_16 = arith.constant 0 : index
    %10 = vector.load %arg1[%c32_15, %c0_16] : memref<40x128xf32, #tpu.memory_space<vmem>>, vector<1x32xf32>
    %11 = vector.broadcast %9 : vector<8x1xf32> to vector<8x32xf32>
    %12 = vector.broadcast %10 : vector<1x32xf32> to vector<8x32xf32>
    %13 = arith.mulf %11, %12 : vector<8x32xf32>
    %14 = vector.broadcast %4 : vector<1x32xf32> to vector<8x32xf32>
    %15 = arith.addf %14, %13 : vector<8x32xf32>
    %c0_17 = arith.constant 0 : index
    %c1 = arith.constant 1 : index
    %16 = vector.load %arg0[%c0_17, %c1] : memref<10x32xf32, #tpu.memory_space<vmem>>, vector<8x1xf32>
    %c32_18 = arith.constant 32 : index
    %c32_19 = arith.constant 32 : index
    %17 = vector.load %arg1[%c32_18, %c32_19] : memref<40x128xf32, #tpu.memory_space<vmem>>, vector<1x32xf32>
    %18 = vector.broadcast %16 : vector<8x1xf32> to vector<8x32xf32>
    %19 = vector.broadcast %17 : vector<1x32xf32> to vector<8x32xf32>
    %20 = arith.mulf %18, %19 : vector<8x32xf32>
    %21 = arith.addf %15, %20 : vector<8x32xf32>
    %c8 = arith.constant 8 : index
    %c0_20 = arith.constant 0 : index
    %22 = vector.load %arg0[%c8, %c0_20] : memref<10x32xf32, #tpu.memory_space<vmem>>, vector<1x32xf32>
    %c9 = arith.constant 9 : index
    %c0_21 = arith.constant 0 : index
    %23 = vector.load %arg0[%c9, %c0_21] : memref<10x32xf32, #tpu.memory_space<vmem>>, vector<1x32xf32>
    %24 = vector.extract_strided_slice %21 {offsets = [0, 0], sizes = [1, 32], strides = [1, 1]} : vector<8x32xf32> to vector<1x32xf32>
    %cst = arith.constant dense<0.000000e+00> : vector<1x32xf32>
    %25 = tpu.matmul %22, %0, %cst {dimension_numbers = #tpu.dot_dimension_numbers<[1], [0], [0], [1], [0, 0, 1, 1], [], []>} : vector<1x32xf32>, vector<32x32xf32>, vector<1x32xf32> -> vector<1x32xf32>
    %26 = arith.addf %24, %25 : vector<1x32xf32>
    %27 = math.tanh %26 : vector<1x32xf32>
    %cst_22 = arith.constant dense<0.000000e+00> : vector<1x32xf32>
    %28 = tpu.matmul %27, %1, %cst_22 {dimension_numbers = #tpu.dot_dimension_numbers<[1], [0], [0], [1], [0, 0, 1, 1], [], []>} : vector<1x32xf32>, vector<32x32xf32>, vector<1x32xf32> -> vector<1x32xf32>
    %29 = arith.addf %28, %5 : vector<1x32xf32>
    %cst_23 = arith.constant dense<0.000000e+00> : vector<1x32xf32>
    %30 = tpu.matmul %23, %2, %cst_23 {dimension_numbers = #tpu.dot_dimension_numbers<[1], [0], [0], [1], [0, 0, 1, 1], [], []>} : vector<1x32xf32>, vector<32x32xf32>, vector<1x32xf32> -> vector<1x32xf32>
    %31 = arith.addf %29, %30 : vector<1x32xf32>
    %32 = math.tanh %31 : vector<1x32xf32>
    %33 = vector.extract_strided_slice %21 {offsets = [1, 0], sizes = [1, 32], strides = [1, 1]} : vector<8x32xf32> to vector<1x32xf32>
    %cst_24 = arith.constant dense<0.000000e+00> : vector<1x32xf32>
    %34 = tpu.matmul %27, %0, %cst_24 {dimension_numbers = #tpu.dot_dimension_numbers<[1], [0], [0], [1], [0, 0, 1, 1], [], []>} : vector<1x32xf32>, vector<32x32xf32>, vector<1x32xf32> -> vector<1x32xf32>
    %35 = arith.addf %33, %34 : vector<1x32xf32>
    %36 = math.tanh %35 : vector<1x32xf32>
    %cst_25 = arith.constant dense<0.000000e+00> : vector<1x32xf32>
    %37 = tpu.matmul %36, %1, %cst_25 {dimension_numbers = #tpu.dot_dimension_numbers<[1], [0], [0], [1], [0, 0, 1, 1], [], []>} : vector<1x32xf32>, vector<32x32xf32>, vector<1x32xf32> -> vector<1x32xf32>
    %38 = arith.addf %37, %5 : vector<1x32xf32>
    %cst_26 = arith.constant dense<0.000000e+00> : vector<1x32xf32>
    %39 = tpu.matmul %32, %2, %cst_26 {dimension_numbers = #tpu.dot_dimension_numbers<[1], [0], [0], [1], [0, 0, 1, 1], [], []>} : vector<1x32xf32>, vector<32x32xf32>, vector<1x32xf32> -> vector<1x32xf32>
    %40 = arith.addf %38, %39 : vector<1x32xf32>
    %41 = math.tanh %40 : vector<1x32xf32>
    %42 = vector.extract_strided_slice %21 {offsets = [2, 0], sizes = [1, 32], strides = [1, 1]} : vector<8x32xf32> to vector<1x32xf32>
    %cst_27 = arith.constant dense<0.000000e+00> : vector<1x32xf32>
    %43 = tpu.matmul %36, %0, %cst_27 {dimension_numbers = #tpu.dot_dimension_numbers<[1], [0], [0], [1], [0, 0, 1, 1], [], []>} : vector<1x32xf32>, vector<32x32xf32>, vector<1x32xf32> -> vector<1x32xf32>
    %44 = arith.addf %42, %43 : vector<1x32xf32>
    %45 = math.tanh %44 : vector<1x32xf32>
    %cst_28 = arith.constant dense<0.000000e+00> : vector<1x32xf32>
    %46 = tpu.matmul %45, %1, %cst_28 {dimension_numbers = #tpu.dot_dimension_numbers<[1], [0], [0], [1], [0, 0, 1, 1], [], []>} : vector<1x32xf32>, vector<32x32xf32>, vector<1x32xf32> -> vector<1x32xf32>
    %47 = arith.addf %46, %5 : vector<1x32xf32>
    %cst_29 = arith.constant dense<0.000000e+00> : vector<1x32xf32>
    %48 = tpu.matmul %41, %2, %cst_29 {dimension_numbers = #tpu.dot_dimension_numbers<[1], [0], [0], [1], [0, 0, 1, 1], [], []>} : vector<1x32xf32>, vector<32x32xf32>, vector<1x32xf32> -> vector<1x32xf32>
    %49 = arith.addf %47, %48 : vector<1x32xf32>
    %50 = math.tanh %49 : vector<1x32xf32>
    %51 = vector.extract_strided_slice %21 {offsets = [3, 0], sizes = [1, 32], strides = [1, 1]} : vector<8x32xf32> to vector<1x32xf32>
    %cst_30 = arith.constant dense<0.000000e+00> : vector<1x32xf32>
    %52 = tpu.matmul %45, %0, %cst_30 {dimension_numbers = #tpu.dot_dimension_numbers<[1], [0], [0], [1], [0, 0, 1, 1], [], []>} : vector<1x32xf32>, vector<32x32xf32>, vector<1x32xf32> -> vector<1x32xf32>
    %53 = arith.addf %51, %52 : vector<1x32xf32>
    %54 = math.tanh %53 : vector<1x32xf32>
    %cst_31 = arith.constant dense<0.000000e+00> : vector<1x32xf32>
    %55 = tpu.matmul %54, %1, %cst_31 {dimension_numbers = #tpu.dot_dimension_numbers<[1], [0], [0], [1], [0, 0, 1, 1], [], []>} : vector<1x32xf32>, vector<32x32xf32>, vector<1x32xf32> -> vector<1x32xf32>
    %56 = arith.addf %55, %5 : vector<1x32xf32>
    %cst_32 = arith.constant dense<0.000000e+00> : vector<1x32xf32>
    %57 = tpu.matmul %50, %2, %cst_32 {dimension_numbers = #tpu.dot_dimension_numbers<[1], [0], [0], [1], [0, 0, 1, 1], [], []>} : vector<1x32xf32>, vector<32x32xf32>, vector<1x32xf32> -> vector<1x32xf32>
    %58 = arith.addf %56, %57 : vector<1x32xf32>
    %59 = math.tanh %58 : vector<1x32xf32>
    %60 = vector.extract_strided_slice %21 {offsets = [4, 0], sizes = [1, 32], strides = [1, 1]} : vector<8x32xf32> to vector<1x32xf32>
    %cst_33 = arith.constant dense<0.000000e+00> : vector<1x32xf32>
    %61 = tpu.matmul %54, %0, %cst_33 {dimension_numbers = #tpu.dot_dimension_numbers<[1], [0], [0], [1], [0, 0, 1, 1], [], []>} : vector<1x32xf32>, vector<32x32xf32>, vector<1x32xf32> -> vector<1x32xf32>
    %62 = arith.addf %60, %61 : vector<1x32xf32>
    %63 = math.tanh %62 : vector<1x32xf32>
    %cst_34 = arith.constant dense<0.000000e+00> : vector<1x32xf32>
    %64 = tpu.matmul %63, %1, %cst_34 {dimension_numbers = #tpu.dot_dimension_numbers<[1], [0], [0], [1], [0, 0, 1, 1], [], []>} : vector<1x32xf32>, vector<32x32xf32>, vector<1x32xf32> -> vector<1x32xf32>
    %65 = arith.addf %64, %5 : vector<1x32xf32>
    %cst_35 = arith.constant dense<0.000000e+00> : vector<1x32xf32>
    %66 = tpu.matmul %59, %2, %cst_35 {dimension_numbers = #tpu.dot_dimension_numbers<[1], [0], [0], [1], [0, 0, 1, 1], [], []>} : vector<1x32xf32>, vector<32x32xf32>, vector<1x32xf32> -> vector<1x32xf32>
    %67 = arith.addf %65, %66 : vector<1x32xf32>
    %68 = math.tanh %67 : vector<1x32xf32>
    %69 = vector.extract_strided_slice %21 {offsets = [5, 0], sizes = [1, 32], strides = [1, 1]} : vector<8x32xf32> to vector<1x32xf32>
    %cst_36 = arith.constant dense<0.000000e+00> : vector<1x32xf32>
    %70 = tpu.matmul %63, %0, %cst_36 {dimension_numbers = #tpu.dot_dimension_numbers<[1], [0], [0], [1], [0, 0, 1, 1], [], []>} : vector<1x32xf32>, vector<32x32xf32>, vector<1x32xf32> -> vector<1x32xf32>
    %71 = arith.addf %69, %70 : vector<1x32xf32>
    %72 = math.tanh %71 : vector<1x32xf32>
    %cst_37 = arith.constant dense<0.000000e+00> : vector<1x32xf32>
    %73 = tpu.matmul %72, %1, %cst_37 {dimension_numbers = #tpu.dot_dimension_numbers<[1], [0], [0], [1], [0, 0, 1, 1], [], []>} : vector<1x32xf32>, vector<32x32xf32>, vector<1x32xf32> -> vector<1x32xf32>
    %74 = arith.addf %73, %5 : vector<1x32xf32>
    %cst_38 = arith.constant dense<0.000000e+00> : vector<1x32xf32>
    %75 = tpu.matmul %68, %2, %cst_38 {dimension_numbers = #tpu.dot_dimension_numbers<[1], [0], [0], [1], [0, 0, 1, 1], [], []>} : vector<1x32xf32>, vector<32x32xf32>, vector<1x32xf32> -> vector<1x32xf32>
    %76 = arith.addf %74, %75 : vector<1x32xf32>
    %77 = math.tanh %76 : vector<1x32xf32>
    %78 = vector.extract_strided_slice %21 {offsets = [6, 0], sizes = [1, 32], strides = [1, 1]} : vector<8x32xf32> to vector<1x32xf32>
    %cst_39 = arith.constant dense<0.000000e+00> : vector<1x32xf32>
    %79 = tpu.matmul %72, %0, %cst_39 {dimension_numbers = #tpu.dot_dimension_numbers<[1], [0], [0], [1], [0, 0, 1, 1], [], []>} : vector<1x32xf32>, vector<32x32xf32>, vector<1x32xf32> -> vector<1x32xf32>
    %80 = arith.addf %78, %79 : vector<1x32xf32>
    %81 = math.tanh %80 : vector<1x32xf32>
    %cst_40 = arith.constant dense<0.000000e+00> : vector<1x32xf32>
    %82 = tpu.matmul %81, %1, %cst_40 {dimension_numbers = #tpu.dot_dimension_numbers<[1], [0], [0], [1], [0, 0, 1, 1], [], []>} : vector<1x32xf32>, vector<32x32xf32>, vector<1x32xf32> -> vector<1x32xf32>
    %83 = arith.addf %82, %5 : vector<1x32xf32>
    %cst_41 = arith.constant dense<0.000000e+00> : vector<1x32xf32>
    %84 = tpu.matmul %77, %2, %cst_41 {dimension_numbers = #tpu.dot_dimension_numbers<[1], [0], [0], [1], [0, 0, 1, 1], [], []>} : vector<1x32xf32>, vector<32x32xf32>, vector<1x32xf32> -> vector<1x32xf32>
    %85 = arith.addf %83, %84 : vector<1x32xf32>
    %86 = math.tanh %85 : vector<1x32xf32>
    %87 = vector.extract_strided_slice %21 {offsets = [7, 0], sizes = [1, 32], strides = [1, 1]} : vector<8x32xf32> to vector<1x32xf32>
    %cst_42 = arith.constant dense<0.000000e+00> : vector<1x32xf32>
    %88 = tpu.matmul %81, %0, %cst_42 {dimension_numbers = #tpu.dot_dimension_numbers<[1], [0], [0], [1], [0, 0, 1, 1], [], []>} : vector<1x32xf32>, vector<32x32xf32>, vector<1x32xf32> -> vector<1x32xf32>
    %89 = arith.addf %87, %88 : vector<1x32xf32>
    %90 = math.tanh %89 : vector<1x32xf32>
    %cst_43 = arith.constant dense<0.000000e+00> : vector<1x32xf32>
    %91 = tpu.matmul %90, %1, %cst_43 {dimension_numbers = #tpu.dot_dimension_numbers<[1], [0], [0], [1], [0, 0, 1, 1], [], []>} : vector<1x32xf32>, vector<32x32xf32>, vector<1x32xf32> -> vector<1x32xf32>
    %92 = arith.addf %91, %5 : vector<1x32xf32>
    %cst_44 = arith.constant dense<0.000000e+00> : vector<1x32xf32>
    %93 = tpu.matmul %86, %2, %cst_44 {dimension_numbers = #tpu.dot_dimension_numbers<[1], [0], [0], [1], [0, 0, 1, 1], [], []>} : vector<1x32xf32>, vector<32x32xf32>, vector<1x32xf32> -> vector<1x32xf32>
    %94 = arith.addf %92, %93 : vector<1x32xf32>
    %95 = math.tanh %94 : vector<1x32xf32>
    %96 = tpu.concatenate %32, %41, %50, %59, %68, %77, %86, %95 in 0 : vector<1x32xf32>, vector<1x32xf32>, vector<1x32xf32>, vector<1x32xf32>, vector<1x32xf32>, vector<1x32xf32>, vector<1x32xf32>, vector<1x32xf32> -> vector<8x32xf32>
    %cst_45 = arith.constant dense<0.000000e+00> : vector<8x32xf32>
    %97 = tpu.matmul %96, %3, %cst_45 {dimension_numbers = #tpu.dot_dimension_numbers<[1], [0], [0], [1], [0, 0, 1, 1], [], []>} : vector<8x32xf32>, vector<32x32xf32>, vector<8x32xf32> -> vector<8x32xf32>
    %98 = vector.broadcast %6 : vector<1x32xf32> to vector<8x32xf32>
    %99 = arith.addf %97, %98 : vector<8x32xf32>
    %cst_46 = arith.constant 0.000000e+00 : f32
    %100 = vector.broadcast %cst_46 : f32 to vector<8x32xf32>
    %101 = arith.maximumf %99, %100 : vector<8x32xf32>
    %102 = vector.broadcast %7 : vector<1x32xf32> to vector<8x32xf32>
    %103 = arith.mulf %101, %102 : vector<8x32xf32>
    %cst_47 = arith.constant dense<0.000000e+00> : vector<8xf32>
    %104 = vector.multi_reduction <add>, %103, %cst_47 [1] : vector<8x32xf32> to vector<8xf32>
    %105 = vector.shape_cast %104 : vector<8xf32> to vector<8x1xf32>
    %106 = vector.broadcast %8 : vector<1x1xf32> to vector<8x1xf32>
    %107 = arith.addf %105, %106 : vector<8x1xf32>
    %c0_48 = arith.constant 0 : index
    %c0_49 = arith.constant 0 : index
    %108 = vector.load %arg2[%c0_48, %c0_49] : memref<8x1xf32, #tpu.memory_space<vmem>>, vector<8x1xf32>
    tpu.vector_store %arg2[%c0_48, %c0_49], %107 {strides = array<i32>} : memref<8x1xf32, #tpu.memory_space<vmem>>, vector<8x1xf32>,
    %c0_50 = arith.constant 0 : index
    %c0_51 = arith.constant 0 : index
    %109 = vector.load %arg3[%c0_50, %c0_51] : memref<2x32xf32, #tpu.memory_space<vmem>>, vector<1x32xf32>
    tpu.vector_store %arg3[%c0_50, %c0_51], %90 {strides = array<i32>} : memref<2x32xf32, #tpu.memory_space<vmem>>, vector<1x32xf32>,
    %c1_52 = arith.constant 1 : index
    %c0_53 = arith.constant 0 : index
    %110 = vector.load %arg3[%c1_52, %c0_53] : memref<2x32xf32, #tpu.memory_space<vmem>>, vector<1x32xf32>
    tpu.vector_store %arg3[%c1_52, %c0_53], %95 {strides = array<i32>} : memref<2x32xf32, #tpu.memory_space<vmem>>, vector<1x32xf32>,
    return
  }
}

</mosaic_0001>

<llo_original>
// kernel: recurrent_policy_forward.1
$region0: #{recurrent_policy_forward.1}
  #allocation0 [shape = 'u32[]', space=smem, size = 0x4, offset = 0x4, fixed_abs, tag = 'smem constant byte address 0x4 - core index']
  #allocation1 [shape = 'u32[144,128]{1,0:T(1,128)}', space=vmem, size = 0x12000, scoped, tag = 'internal scratch']
  %s0 = inlined_call_operand.vmem [shape: f32[10,32], index: 0, kind: input, shape index: {}]
  %s1 = inlined_call_operand.vmem [shape: f32[40,128], index: 1, kind: input, shape index: {}]
  %s2 = inlined_call_operand.vmem [shape: f32[8,1], index: 2, kind: output, shape index: {0}]
  %s3 = inlined_call_operand.hbm [shape: f32[2,32], index: 3, kind: output, shape index: {1}]
  %4 = xla_tuple %s2, %s3
  %s5 = sld [smem:[#allocation0]]
  $region26: #{recurrent_policy_forward.1} parent=0
    _
  %s7 = ssub.s32 1, %s5
  %s8 = scalar_select 0, %s7, %s5
  $region1: #{recurrent_policy_forward.1} parent=0
    #allocation2 [shape = 'u8[1024]{0}', space=vmem, size = 0x400, scoped, tag = 'output window, operand 1, single buffered']
    #allocation3 [shape = 's32[1]{0}', space=sflag, size = 0x4, scoped, tag = 'scoped memory for recurrent_policy_forward.1']
    %9 = vsyncpa [#allocation3], 0
    // Predicated region
    $region2: #{recurrent_policy_forward.1} parent=1 // pred_check
      _
    $region3: #{recurrent_policy_forward.1} parent=1 // pred_check_branch
      %11 = sbr.rel (0) target = $region5
    $region4: #{recurrent_policy_forward.1} parent=1 // pred_region
      _
    $region5: #{recurrent_policy_forward.1} parent=1 // pred_fallthru
      _
    // Predicated region
    $region6: #{recurrent_policy_forward.1} parent=1 // pred_check
      _
    $region7: #{recurrent_policy_forward.1} parent=1 // pred_check_branch
      %13 = sbr.rel (0) target = $region9
    $region8: #{recurrent_policy_forward.1} parent=1 // pred_region
      _
    $region9: #{recurrent_policy_forward.1} parent=1 // pred_fallthru
      _
    %v14 = vld [vmem:[%s1] sm:$0xff]
    %v15 = vld [vmem:[%s1 + $0x8] sm:$0xff]
    %v16 = vld [vmem:[%s1 + $0x10] sm:$0xff]
    %v17 = vld [vmem:[%s1 + $0x18] sm:$0xff]
    %v18 = vld [vmem:[%s1 + $0x20] sm:$0x1]
    %v19 = vld [vmem:[%s1 + $0x21] sm:$0x1]
    %v20 = vld [vmem:[%s0] sm:$0xff]
    %22 = vset.pattern.permute.xlu0 0
    %23 = vperm.xlu0 %22, %v20
    %v24 = vpop.permute.xlu0 %23
    %v26 = vlaneseq
    %v27 = vshrl.u32 %v26, 7
    %v28 = vsub.s32 0, %v27
    %v29 = vrot.slane %v18, %v28
    %v30 = vmul.f32 %v24, %v29
    %32 = vrot.lane.b32.xlu0 %v30, 64
    %v33 = vpop.permute.xlu0 %32
    %v35 = vadd.f32 %v29, %v33
    %36 = vset.pattern.permute.xlu0 1
    %37 = vperm.xlu0 %36, %v20
    %v38 = vpop.permute.xlu0 %37
    %v40 = vmul.f32 %v38, %v29
    %42 = vrot.lane.b32.xlu0 %v40, 32
    %v43 = vpop.permute.xlu0 %42
    %v45 = vadd.f32 %v35, %v43
    %v46 = vld [vmem:[%s0 + $0x8] sm:$0x1]
    %v47 = vld [vmem:[%s0 + $0x9] sm:$0x1]
    %vm48 = vcmask 261120
    %v50 = vsel %vm48, %v46, 0
    %52 = vmatprep.subr.mxu0 0.0
    %53 = vmatpush1.msra.mxu0 %v14
    %54 = vmatprep.subr.mxu0 0.0
    %55 = vmatpush1.msra.mxu0 %v15
    %56 = vmatprep.subr.mxu0 0.0
    %57 = vmatpush1.msra.mxu0 %v16
    %58 = vmatprep.subr.mxu0 0.0
    %59 = vmatpush1.msra.mxu0 %v17
    %60 = vmatprep.subr.mxu0 0.0
    %61 = vmatpush1.msra.mxu0 0.0
    %62 = vmatprep.subr.mxu0 0.0
    %63 = vmatpush1.msra.mxu0 0.0
    %64 = vmatprep.subr.mxu0 0.0
    %65 = vmatpush1.msra.mxu0 0.0
    %66 = vmatprep.subr.mxu0 0.0
    %67 = vmatpush1.msra.mxu0 0.0
    %68 = vmatprep.subr.mxu0 0.0
    %69 = vmatpush1.msra.mxu0 0.0
    %70 = vmatprep.subr.mxu0 0.0
    %71 = vmatpush1.msra.mxu0 0.0
    %72 = vmatprep.subr.mxu0 0.0
    %73 = vmatpush1.msra.mxu0 0.0
    %74 = vmatprep.subr.mxu0 0.0
    %75 = vmatpush1.msra.mxu0 0.0
    %76 = vmatprep.subr.mxu0 0.0
    %77 = vmatpush1.msra.mxu0 0.0
    %78 = vmatprep.subr.mxu0 0.0
    %79 = vmatpush1.msra.mxu0 0.0
    %80 = vmatprep.subr.mxu0 0.0
    %81 = vmatpush1.msra.mxu0 0.0
    %82 = vmatprep.subr.mxu0 0.0
    %83 = vmatpush1.msra.mxu0 0.0
    %84 = vmatprep.subr.mxu0 0.0
    %85 = vmatpush1.msra.mxu0 0.0
    %86 = vmatprep.subr.mxu0 0.0
    %87 = vmatpush1.msra.mxu0 0.0
    %88 = vmatprep.subr.mxu0 0.0
    %89 = vmatpush1.msra.mxu0 0.0
    %90 = vmatprep.subr.mxu0 0.0
    %91 = vmatpush1.msra.mxu0 0.0
    %92 = vmatprep.subr.mxu0 0.0
    %93 = vmatpush1.msra.mxu0 0.0
    %94 = vmatprep.subr.mxu0 0.0
    %95 = vmatpush1.msra.mxu0 0.0
    %96 = vmatprep.subr.mxu0 0.0
    %97 = vmatpush1.msra.mxu0 0.0
    %98 = vmatprep.subr.mxu0 0.0
    %99 = vmatpush1.msra.mxu0 0.0
    %100 = vmatprep.subr.mxu0 0.0
    %101 = vmatpush1.msra.mxu0 0.0
    %102 = vmatprep.subr.mxu0 0.0
    %103 = vmatpush1.msra.mxu0 0.0
    %104 = vmatprep.subr.mxu0 0.0
    %105 = vmatpush1.msra.mxu0 0.0
    %106 = vmatprep.subr.mxu0 0.0
    %107 = vmatpush1.msra.mxu0 0.0
    %108 = vmatprep.subr.mxu0 0.0
    %109 = vmatpush1.msra.mxu0 0.0
    %110 = vmatprep.subr.mxu0 0.0
    %111 = vmatpush1.msra.mxu0 0.0
    %112 = vmatprep.subr.mxu0 0.0
    %113 = vmatpush1.msra.mxu0 0.0
    %114 = vmatprep.subr.mxu0 0.0
    %115 = vmatpush1.msra.mxu0 0.0
    %116 = vmatprep.mubr.f32.mxu0 0.0
    %117 = vmatmul.mubr.f32.gmra.mrb[0].mxu0 %v50
    %v118 = vpop.f32.mrb[0].mxu0
    %v119 = vadd.f32 0.0, %v118
    %v120 = vpop.f32.mrb[0].mxu0
    %121 = vdwg.mxu0
    %123 = vrot.lane.b32.xlu0 %v119, 64
    %v124 = vpop.permute.xlu0 %123
    %v126 = vadd.f32 %v45, %v124
    %v127 = vtanh.pop %v126
    %129 = vrot.lane.b32.xlu0 %v127, 64
    %v130 = vpop.permute.xlu0 %129
    %135 = vrot.lane.b32.xlu0 %v14, 96
    %v136 = vpop.permute.xlu0 %135
    %137 = vrot.lane.b32.xlu0 %v15, 96
    %v138 = vpop.permute.xlu0 %137
    %139 = vrot.lane.b32.xlu0 %v16, 96
    %v140 = vpop.permute.xlu0 %139
    %141 = vrot.lane.b32.xlu0 %v17, 96
    %v142 = vpop.permute.xlu0 %141
    %148 = vrot.lane.b32.xlu0 %v18, 32
    %v149 = vpop.permute.xlu0 %148
    %v151 = vsel %vm48, %v130, 0
    %153 = vmatprep.subr.mxu0 0.0
    %154 = vmatpush1.msra.mxu0 %v136
    %155 = vmatprep.subr.mxu0 0.0
    %156 = vmatpush1.msra.mxu0 %v138
    %157 = vmatprep.subr.mxu0 0.0
    %158 = vmatpush1.msra.mxu0 %v140
    %159 = vmatprep.subr.mxu0 0.0
    %160 = vmatpush1.msra.mxu0 %v142
    %161 = vmatprep.subr.mxu0 0.0
    %162 = vmatpush1.msra.mxu0 0.0
    %163 = vmatprep.subr.mxu0 0.0
    %164 = vmatpush1.msra.mxu0 0.0
    %165 = vmatprep.subr.mxu0 0.0
    %166 = vmatpush1.msra.mxu0 0.0
    %167 = vmatprep.subr.mxu0 0.0
    %168 = vmatpush1.msra.mxu0 0.0
    %169 = vmatprep.subr.mxu0 0.0
    %170 = vmatpush1.msra.mxu0 0.0
    %171 = vmatprep.subr.mxu0 0.0
    %172 = vmatpush1.msra.mxu0 0.0
    %173 = vmatprep.subr.mxu0 0.0
    %174 = vmatpush1.msra.mxu0 0.0
    %175 = vmatprep.subr.mxu0 0.0
    %176 = vmatpush1.msra.mxu0 0.0
    %177 = vmatprep.subr.mxu0 0.0
    %178 = vmatpush1.msra.mxu0 0.0
    %179 = vmatprep.subr.mxu0 0.0
    %180 = vmatpush1.msra.mxu0 0.0
    %181 = vmatprep.subr.mxu0 0.0
    %182 = vmatpush1.msra.mxu0 0.0
    %183 = vmatprep.subr.mxu0 0.0
    %184 = vmatpush1.msra.mxu0 0.0
    %185 = vmatprep.subr.mxu0 0.0
    %186 = vmatpush1.msra.mxu0 0.0
    %187 = vmatprep.subr.mxu0 0.0
    %188 = vmatpush1.msra.mxu0 0.0
    %189 = vmatprep.subr.mxu0 0.0
    %190 = vmatpush1.msra.mxu0 0.0
    %191 = vmatprep.subr.mxu0 0.0
    %192 = vmatpush1.msra.mxu0 0.0
    %193 = vmatprep.subr.mxu0 0.0
    %194 = vmatpush1.msra.mxu0 0.0
    %195 = vmatprep.subr.mxu0 0.0
    %196 = vmatpush1.msra.mxu0 0.0
    %197 = vmatprep.subr.mxu0 0.0
    %198 = vmatpush1.msra.mxu0 0.0
    %199 = vmatprep.subr.mxu0 0.0
    %200 = vmatpush1.msra.mxu0 0.0
    %201 = vmatprep.subr.mxu0 0.0
    %202 = vmatpush1.msra.mxu0 0.0
    %203 = vmatprep.subr.mxu0 0.0
    %204 = vmatpush1.msra.mxu0 0.0
    %205 = vmatprep.subr.mxu0 0.0
    %206 = vmatpush1.msra.mxu0 0.0
    %207 = vmatprep.subr.mxu0 0.0
    %208 = vmatpush1.msra.mxu0 0.0
    %209 = vmatprep.subr.mxu0 0.0
    %210 = vmatpush1.msra.mxu0 0.0
    %211 = vmatprep.subr.mxu0 0.0
    %212 = vmatpush1.msra.mxu0 0.0
    %213 = vmatprep.subr.mxu0 0.0
    %214 = vmatpush1.msra.mxu0 0.0
    %215 = vmatprep.subr.mxu0 0.0
    %216 = vmatpush1.msra.mxu0 0.0
    %217 = vmatprep.mubr.f32.mxu0 0.0
    %218 = vmatmul.mubr.f32.gmra.mrb[0].mxu0 %v151
    %v219 = vpop.f32.mrb[0].mxu0
    %v220 = vadd.f32 %v149, %v219
    %v221 = vpop.f32.mrb[0].mxu0
    %222 = vdwg.mxu0
    %223 = vrot.lane.b32.xlu0 %v14, 64
    %v224 = vpop.permute.xlu0 %223
    %225 = vrot.lane.b32.xlu0 %v15, 64
    %v226 = vpop.permute.xlu0 %225
    %227 = vrot.lane.b32.xlu0 %v16, 64
    %v228 = vpop.permute.xlu0 %227
    %229 = vrot.lane.b32.xlu0 %v17, 64
    %v230 = vpop.permute.xlu0 %229
    %v236 = vsel %vm48, %v47, 0
    %238 = vmatprep.subr.mxu0 0.0
    %239 = vmatpush1.msra.mxu0 %v224
    %240 = vmatprep.subr.mxu0 0.0
    %241 = vmatpush1.msra.mxu0 %v226
    %242 = vmatprep.subr.mxu0 0.0
    %243 = vmatpush1.msra.mxu0 %v228
    %244 = vmatprep.subr.mxu0 0.0
    %245 = vmatpush1.msra.mxu0 %v230
    %246 = vmatprep.subr.mxu0 0.0
    %247 = vmatpush1.msra.mxu0 0.0
    %248 = vmatprep.subr.mxu0 0.0
    %249 = vmatpush1.msra.mxu0 0.0
    %250 = vmatprep.subr.mxu0 0.0
    %251 = vmatpush1.msra.mxu0 0.0
    %252 = vmatprep.subr.mxu0 0.0
    %253 = vmatpush1.msra.mxu0 0.0
    %254 = vmatprep.subr.mxu0 0.0
    %255 = vmatpush1.msra.mxu0 0.0
    %256 = vmatprep.subr.mxu0 0.0
    %257 = vmatpush1.msra.mxu0 0.0
    %258 = vmatprep.subr.mxu0 0.0
    %259 = vmatpush1.msra.mxu0 0.0
    %260 = vmatprep.subr.mxu0 0.0
    %261 = vmatpush1.msra.mxu0 0.0
    %262 = vmatprep.subr.mxu0 0.0
    %263 = vmatpush1.msra.mxu0 0.0
    %264 = vmatprep.subr.mxu0 0.0
    %265 = vmatpush1.msra.mxu0 0.0
    %266 = vmatprep.subr.mxu0 0.0
    %267 = vmatpush1.msra.mxu0 0.0
    %268 = vmatprep.subr.mxu0 0.0
    %269 = vmatpush1.msra.mxu0 0.0
    %270 = vmatprep.subr.mxu0 0.0
    %271 = vmatpush1.msra.mxu0 0.0
    %272 = vmatprep.subr.mxu0 0.0
    %273 = vmatpush1.msra.mxu0 0.0
    %274 = vmatprep.subr.mxu0 0.0
    %275 = vmatpush1.msra.mxu0 0.0
    %276 = vmatprep.subr.mxu0 0.0
    %277 = vmatpush1.msra.mxu0 0.0
    %278 = vmatprep.subr.mxu0 0.0
    %279 = vmatpush1.msra.mxu0 0.0
    %280 = vmatprep.subr.mxu0 0.0
    %281 = vmatpush1.msra.mxu0 0.0
    %282 = vmatprep.subr.mxu0 0.0
    %283 = vmatpush1.msra.mxu0 0.0
    %284 = vmatprep.subr.mxu0 0.0
    %285 = vmatpush1.msra.mxu0 0.0
    %286 = vmatprep.subr.mxu0 0.0
    %287 = vmatpush1.msra.mxu0 0.0
    %288 = vmatprep.subr.mxu0 0.0
    %289 = vmatpush1.msra.mxu0 0.0
    %290 = vmatprep.subr.mxu0 0.0
    %291 = vmatpush1.msra.mxu0 0.0
    %292 = vmatprep.subr.mxu0 0.0
    %293 = vmatpush1.msra.mxu0 0.0
    %294 = vmatprep.subr.mxu0 0.0
    %295 = vmatpush1.msra.mxu0 0.0
    %296 = vmatprep.subr.mxu0 0.0
    %297 = vmatpush1.msra.mxu0 0.0
    %298 = vmatprep.subr.mxu0 0.0
    %299 = vmatpush1.msra.mxu0 0.0
    %300 = vmatprep.subr.mxu0 0.0
    %301 = vmatpush1.msra.mxu0 0.0
    %302 = vmatprep.mubr.f32.mxu0 0.0
    %303 = vmatmul.mubr.f32.gmra.mrb[0].mxu0 %v236
    %v304 = vpop.f32.mrb[0].mxu0
    %v305 = vadd.f32 0.0, %v304
    %v306 = vpop.f32.mrb[0].mxu0
    %307 = vdwg.mxu0
    %v308 = vadd.f32 %v220, %v305
    %v309 = vtanh.pop %v308
    %310 = vmatprep.subr.mxu0 0.0
    %311 = vmatpush1.msra.mxu0 %v14
    %312 = vmatprep.subr.mxu0 0.0
    %313 = vmatpush1.msra.mxu0 %v15
    %314 = vmatprep.subr.mxu0 0.0
    %315 = vmatpush1.msra.mxu0 %v16
    %316 = vmatprep.subr.mxu0 0.0
    %317 = vmatpush1.msra.mxu0 %v17
    %318 = vmatprep.subr.mxu0 0.0
    %319 = vmatpush1.msra.mxu0 0.0
    %320 = vmatprep.subr.mxu0 0.0
    %321 = vmatpush1.msra.mxu0 0.0
    %322 = vmatprep.subr.mxu0 0.0
    %323 = vmatpush1.msra.mxu0 0.0
    %324 = vmatprep.subr.mxu0 0.0
    %325 = vmatpush1.msra.mxu0 0.0
    %326 = vmatprep.subr.mxu0 0.0
    %327 = vmatpush1.msra.mxu0 0.0
    %328 = vmatprep.subr.mxu0 0.0
    %329 = vmatpush1.msra.mxu0 0.0
    %330 = vmatprep.subr.mxu0 0.0
    %331 = vmatpush1.msra.mxu0 0.0
    %332 = vmatprep.subr.mxu0 0.0
    %333 = vmatpush1.msra.mxu0 0.0
    %334 = vmatprep.subr.mxu0 0.0
    %335 = vmatpush1.msra.mxu0 0.0
    %336 = vmatprep.subr.mxu0 0.0
    %337 = vmatpush1.msra.mxu0 0.0
    %338 = vmatprep.subr.mxu0 0.0
    %339 = vmatpush1.msra.mxu0 0.0
    %340 = vmatprep.subr.mxu0 0.0
    %341 = vmatpush1.msra.mxu0 0.0
    %342 = vmatprep.subr.mxu0 0.0
    %343 = vmatpush1.msra.mxu0 0.0
    %344 = vmatprep.subr.mxu0 0.0
    %345 = vmatpush1.msra.mxu0 0.0
    %346 = vmatprep.subr.mxu0 0.0
    %347 = vmatpush1.msra.mxu0 0.0
    %348 = vmatprep.subr.mxu0 0.0
    %349 = vmatpush1.msra.mxu0 0.0
    %350 = vmatprep.subr.mxu0 0.0
    %351 = vmatpush1.msra.mxu0 0.0
    %352 = vmatprep.subr.mxu0 0.0
    %353 = vmatpush1.msra.mxu0 0.0
    %354 = vmatprep.subr.mxu0 0.0
    %355 = vmatpush1.msra.mxu0 0.0
    %356 = vmatprep.subr.mxu0 0.0
    %357 = vmatpush1.msra.mxu0 0.0
    %358 = vmatprep.subr.mxu0 0.0
    %359 = vmatpush1.msra.mxu0 0.0
    %360 = vmatprep.subr.mxu0 0.0
    %361 = vmatpush1.msra.mxu0 0.0
    %362 = vmatprep.subr.mxu0 0.0
    %363 = vmatpush1.msra.mxu0 0.0
    %364 = vmatprep.subr.mxu0 0.0
    %365 = vmatpush1.msra.mxu0 0.0
    %366 = vmatprep.subr.mxu0 0.0
    %367 = vmatpush1.msra.mxu0 0.0
    %368 = vmatprep.subr.mxu0 0.0
    %369 = vmatpush1.msra.mxu0 0.0
    %370 = vmatprep.subr.mxu0 0.0
    %371 = vmatpush1.msra.mxu0 0.0
    %372 = vmatprep.subr.mxu0 0.0
    %373 = vmatpush1.msra.mxu0 0.0
    %374 = vmatprep.mubr.f32.mxu0 0.0
    %375 = vmatmul.mubr.f32.gmra.mrb[0].mxu0 %v151
    %v376 = vpop.f32.mrb[0].mxu0
    %v377 = vadd.f32 0.0, %v376
    %v378 = vpop.f32.mrb[0].mxu0
    %379 = vdwg.mxu0
    %v381 = vrot.slane %v377, 7
    %382 = vrot.lane.b32.xlu0 %v381, 64
    %v383 = vpop.permute.xlu0 %382
    %v385 = vadd.f32 %v45, %v383
    %v386 = vtanh.pop %v385
    %v388 = vrot.slane %v386, 1
    %389 = vrot.lane.b32.xlu0 %v388, 64
    %v390 = vpop.permute.xlu0 %389
    %v391 = vsel %vm48, %v390, 0
    %393 = vmatprep.subr.mxu0 0.0
    %394 = vmatpush1.msra.mxu0 %v136
    %395 = vmatprep.subr.mxu0 0.0
    %396 = vmatpush1.msra.mxu0 %v138
    %397 = vmatprep.subr.mxu0 0.0
    %398 = vmatpush1.msra.mxu0 %v140
    %399 = vmatprep.subr.mxu0 0.0
    %400 = vmatpush1.msra.mxu0 %v142
    %401 = vmatprep.subr.mxu0 0.0
    %402 = vmatpush1.msra.mxu0 0.0
    %403 = vmatprep.subr.mxu0 0.0
    %404 = vmatpush1.msra.mxu0 0.0
    %405 = vmatprep.subr.mxu0 0.0
    %406 = vmatpush1.msra.mxu0 0.0
    %407 = vmatprep.subr.mxu0 0.0
    %408 = vmatpush1.msra.mxu0 0.0
    %409 = vmatprep.subr.mxu0 0.0
    %410 = vmatpush1.msra.mxu0 0.0
    %411 = vmatprep.subr.mxu0 0.0
    %412 = vmatpush1.msra.mxu0 0.0
    %413 = vmatprep.subr.mxu0 0.0
    %414 = vmatpush1.msra.mxu0 0.0
    %415 = vmatprep.subr.mxu0 0.0
    %416 = vmatpush1.msra.mxu0 0.0
    %417 = vmatprep.subr.mxu0 0.0
    %418 = vmatpush1.msra.mxu0 0.0
    %419 = vmatprep.subr.mxu0 0.0
    %420 = vmatpush1.msra.mxu0 0.0
    %421 = vmatprep.subr.mxu0 0.0
    %422 = vmatpush1.msra.mxu0 0.0
    %423 = vmatprep.subr.mxu0 0.0
    %424 = vmatpush1.msra.mxu0 0.0
    %425 = vmatprep.subr.mxu0 0.0
    %426 = vmatpush1.msra.mxu0 0.0
    %427 = vmatprep.subr.mxu0 0.0
    %428 = vmatpush1.msra.mxu0 0.0
    %429 = vmatprep.subr.mxu0 0.0
    %430 = vmatpush1.msra.mxu0 0.0
    %431 = vmatprep.subr.mxu0 0.0
    %432 = vmatpush1.msra.mxu0 0.0
    %433 = vmatprep.subr.mxu0 0.0
    %434 = vmatpush1.msra.mxu0 0.0
    %435 = vmatprep.subr.mxu0 0.0
    %436 = vmatpush1.msra.mxu0 0.0
    %437 = vmatprep.subr.mxu0 0.0
    %438 = vmatpush1.msra.mxu0 0.0
    %439 = vmatprep.subr.mxu0 0.0
    %440 = vmatpush1.msra.mxu0 0.0
    %441 = vmatprep.subr.mxu0 0.0
    %442 = vmatpush1.msra.mxu0 0.0
    %443 = vmatprep.subr.mxu0 0.0
    %444 = vmatpush1.msra.mxu0 0.0
    %445 = vmatprep.subr.mxu0 0.0
    %446 = vmatpush1.msra.mxu0 0.0
    %447 = vmatprep.subr.mxu0 0.0
    %448 = vmatpush1.msra.mxu0 0.0
    %449 = vmatprep.subr.mxu0 0.0
    %450 = vmatpush1.msra.mxu0 0.0
    %451 = vmatprep.subr.mxu0 0.0
    %452 = vmatpush1.msra.mxu0 0.0
    %453 = vmatprep.subr.mxu0 0.0
    %454 = vmatpush1.msra.mxu0 0.0
    %455 = vmatprep.subr.mxu0 0.0
    %456 = vmatpush1.msra.mxu0 0.0
    %457 = vmatprep.mubr.f32.mxu0 0.0
    %458 = vmatmul.mubr.f32.gmra.mrb[0].mxu0 %v391
    %v459 = vpop.f32.mrb[0].mxu0
    %v460 = vadd.f32 %v149, %v459
    %v461 = vpop.f32.mrb[0].mxu0
    %462 = vdwg.mxu0
    %v464 = vsel %vm48, %v309, 0
    %466 = vmatprep.subr.mxu0 0.0
    %467 = vmatpush1.msra.mxu0 %v224
    %468 = vmatprep.subr.mxu0 0.0
    %469 = vmatpush1.msra.mxu0 %v226
    %470 = vmatprep.subr.mxu0 0.0
    %471 = vmatpush1.msra.mxu0 %v228
    %472 = vmatprep.subr.mxu0 0.0
    %473 = vmatpush1.msra.mxu0 %v230
    %474 = vmatprep.subr.mxu0 0.0
    %475 = vmatpush1.msra.mxu0 0.0
    %476 = vmatprep.subr.mxu0 0.0
    %477 = vmatpush1.msra.mxu0 0.0
    %478 = vmatprep.subr.mxu0 0.0
    %479 = vmatpush1.msra.mxu0 0.0
    %480 = vmatprep.subr.mxu0 0.0
    %481 = vmatpush1.msra.mxu0 0.0
    %482 = vmatprep.subr.mxu0 0.0
    %483 = vmatpush1.msra.mxu0 0.0
    %484 = vmatprep.subr.mxu0 0.0
    %485 = vmatpush1.msra.mxu0 0.0
    %486 = vmatprep.subr.mxu0 0.0
    %487 = vmatpush1.msra.mxu0 0.0
    %488 = vmatprep.subr.mxu0 0.0
    %489 = vmatpush1.msra.mxu0 0.0
    %490 = vmatprep.subr.mxu0 0.0
    %491 = vmatpush1.msra.mxu0 0.0
    %492 = vmatprep.subr.mxu0 0.0
    %493 = vmatpush1.msra.mxu0 0.0
    %494 = vmatprep.subr.mxu0 0.0
    %495 = vmatpush1.msra.mxu0 0.0
    %496 = vmatprep.subr.mxu0 0.0
    %497 = vmatpush1.msra.mxu0 0.0
    %498 = vmatprep.subr.mxu0 0.0
    %499 = vmatpush1.msra.mxu0 0.0
    %500 = vmatprep.subr.mxu0 0.0
    %501 = vmatpush1.msra.mxu0 0.0
    %502 = vmatprep.subr.mxu0 0.0
    %503 = vmatpush1.msra.mxu0 0.0
    %504 = vmatprep.subr.mxu0 0.0
    %505 = vmatpush1.msra.mxu0 0.0
    %506 = vmatprep.subr.mxu0 0.0
    %507 = vmatpush1.msra.mxu0 0.0
    %508 = vmatprep.subr.mxu0 0.0
    %509 = vmatpush1.msra.mxu0 0.0
    %510 = vmatprep.subr.mxu0 0.0
    %511 = vmatpush1.msra.mxu0 0.0
    %512 = vmatprep.subr.mxu0 0.0
    %513 = vmatpush1.msra.mxu0 0.0
    %514 = vmatprep.subr.mxu0 0.0
    %515 = vmatpush1.msra.mxu0 0.0
    %516 = vmatprep.subr.mxu0 0.0
    %517 = vmatpush1.msra.mxu0 0.0
    %518 = vmatprep.subr.mxu0 0.0
    %519 = vmatpush1.msra.mxu0 0.0
    %520 = vmatprep.subr.mxu0 0.0
    %521 = vmatpush1.msra.mxu0 0.0
    %522 = vmatprep.subr.mxu0 0.0
    %523 = vmatpush1.msra.mxu0 0.0
    %524 = vmatprep.subr.mxu0 0.0
    %525 = vmatpush1.msra.mxu0 0.0
    %526 = vmatprep.subr.mxu0 0.0
    %527 = vmatpush1.msra.mxu0 0.0
    %528 = vmatprep.subr.mxu0 0.0
    %529 = vmatpush1.msra.mxu0 0.0
    %530 = vmatprep.mubr.f32.mxu0 0.0
    %531 = vmatmul.mubr.f32.gmra.mrb[0].mxu0 %v464
    %v532 = vpop.f32.mrb[0].mxu0
    %v533 = vadd.f32 0.0, %v532
    %v534 = vpop.f32.mrb[0].mxu0
    %535 = vdwg.mxu0
    %v536 = vadd.f32 %v460, %v533
    %v537 = vtanh.pop %v536
    %538 = vmatprep.subr.mxu0 0.0
    %539 = vmatpush1.msra.mxu0 %v14
    %540 = vmatprep.subr.mxu0 0.0
    %541 = vmatpush1.msra.mxu0 %v15
    %542 = vmatprep.subr.mxu0 0.0
    %543 = vmatpush1.msra.mxu0 %v16
    %544 = vmatprep.subr.mxu0 0.0
    %545 = vmatpush1.msra.mxu0 %v17
    %546 = vmatprep.subr.mxu0 0.0
    %547 = vmatpush1.msra.mxu0 0.0
    %548 = vmatprep.subr.mxu0 0.0
    %549 = vmatpush1.msra.mxu0 0.0
    %550 = vmatprep.subr.mxu0 0.0
    %551 = vmatpush1.msra.mxu0 0.0
    %552 = vmatprep.subr.mxu0 0.0
    %553 = vmatpush1.msra.mxu0 0.0
    %554 = vmatprep.subr.mxu0 0.0
    %555 = vmatpush1.msra.mxu0 0.0
    %556 = vmatprep.subr.mxu0 0.0
    %557 = vmatpush1.msra.mxu0 0.0
    %558 = vmatprep.subr.mxu0 0.0
    %559 = vmatpush1.msra.mxu0 0.0
    %560 = vmatprep.subr.mxu0 0.0
    %561 = vmatpush1.msra.mxu0 0.0
    %562 = vmatprep.subr.mxu0 0.0
    %563 = vmatpush1.msra.mxu0 0.0
    %564 = vmatprep.subr.mxu0 0.0
    %565 = vmatpush1.msra.mxu0 0.0
    %566 = vmatprep.subr.mxu0 0.0
    %567 = vmatpush1.msra.mxu0 0.0
    %568 = vmatprep.subr.mxu0 0.0
    %569 = vmatpush1.msra.mxu0 0.0
    %570 = vmatprep.subr.mxu0 0.0
    %571 = vmatpush1.msra.mxu0 0.0
    %572 = vmatprep.subr.mxu0 0.0
    %573 = vmatpush1.msra.mxu0 0.0
    %574 = vmatprep.subr.mxu0 0.0
    %575 = vmatpush1.msra.mxu0 0.0
    %576 = vmatprep.subr.mxu0 0.0
    %577 = vmatpush1.msra.mxu0 0.0
    %578 = vmatprep.subr.mxu0 0.0
    %579 = vmatpush1.msra.mxu0 0.0
    %580 = vmatprep.subr.mxu0 0.0
    %581 = vmatpush1.msra.mxu0 0.0
    %582 = vmatprep.subr.mxu0 0.0
    %583 = vmatpush1.msra.mxu0 0.0
    %584 = vmatprep.subr.mxu0 0.0
    %585 = vmatpush1.msra.mxu0 0.0
    %586 = vmatprep.subr.mxu0 0.0
    %587 = vmatpush1.msra.mxu0 0.0
    %588 = vmatprep.subr.mxu0 0.0
    %589 = vmatpush1.msra.mxu0 0.0
    %590 = vmatprep.subr.mxu0 0.0
    %591 = vmatpush1.msra.mxu0 0.0
    %592 = vmatprep.subr.mxu0 0.0
    %593 = vmatpush1.msra.mxu0 0.0
    %594 = vmatprep.subr.mxu0 0.0
    %595 = vmatpush1.msra.mxu0 0.0
    %596 = vmatprep.subr.mxu0 0.0
    %597 = vmatpush1.msra.mxu0 0.0
    %598 = vmatprep.subr.mxu0 0.0
    %599 = vmatpush1.msra.mxu0 0.0
    %600 = vmatprep.subr.mxu0 0.0
    %601 = vmatpush1.msra.mxu0 0.0
    %602 = vmatprep.mubr.f32.mxu0 0.0
    %603 = vmatmul.mubr.f32.gmra.mrb[0].mxu0 %v391
    %v604 = vpop.f32.mrb[0].mxu0
    %v605 = vadd.f32 0.0, %v604
    %v606 = vpop.f32.mrb[0].mxu0
    %607 = vdwg.mxu0
    %v609 = vrot.slane %v605, 6
    %610 = vrot.lane.b32.xlu0 %v609, 64
    %v611 = vpop.permute.xlu0 %610
    %v613 = vadd.f32 %v45, %v611
    %v614 = vtanh.pop %v613
    %v616 = vrot.slane %v614, 2
    %617 = vrot.lane.b32.xlu0 %v616, 64
    %v618 = vpop.permute.xlu0 %617
    %v619 = vsel %vm48, %v618, 0
    %621 = vmatprep.subr.mxu0 0.0
    %622 = vmatpush1.msra.mxu0 %v136
    %623 = vmatprep.subr.mxu0 0.0
    %624 = vmatpush1.msra.mxu0 %v138
    %625 = vmatprep.subr.mxu0 0.0
    %626 = vmatpush1.msra.mxu0 %v140
    %627 = vmatprep.subr.mxu0 0.0
    %628 = vmatpush1.msra.mxu0 %v142
    %629 = vmatprep.subr.mxu0 0.0
    %630 = vmatpush1.msra.mxu0 0.0
    %631 = vmatprep.subr.mxu0 0.0
    %632 = vmatpush1.msra.mxu0 0.0
    %633 = vmatprep.subr.mxu0 0.0
    %634 = vmatpush1.msra.mxu0 0.0
    %635 = vmatprep.subr.mxu0 0.0
    %636 = vmatpush1.msra.mxu0 0.0
    %637 = vmatprep.subr.mxu0 0.0
    %638 = vmatpush1.msra.mxu0 0.0
    %639 = vmatprep.subr.mxu0 0.0
    %640 = vmatpush1.msra.mxu0 0.0
    %641 = vmatprep.subr.mxu0 0.0
    %642 = vmatpush1.msra.mxu0 0.0
    %643 = vmatprep.subr.mxu0 0.0
    %644 = vmatpush1.msra.mxu0 0.0
    %645 = vmatprep.subr.mxu0 0.0
    %646 = vmatpush1.msra.mxu0 0.0
    %647 = vmatprep.subr.mxu0 0.0
    %648 = vmatpush1.msra.mxu0 0.0
    %649 = vmatprep.subr.mxu0 0.0
    %650 = vmatpush1.msra.mxu0 0.0
    %651 = vmatprep.subr.mxu0 0.0
    %652 = vmatpush1.msra.mxu0 0.0
    %653 = vmatprep.subr.mxu0 0.0
    %654 = vmatpush1.msra.mxu0 0.0
    %655 = vmatprep.subr.mxu0 0.0
    %656 = vmatpush1.msra.mxu0 0.0
    %657 = vmatprep.subr.mxu0 0.0
    %658 = vmatpush1.msra.mxu0 0.0
    %659 = vmatprep.subr.mxu0 0.0
    %660 = vmatpush1.msra.mxu0 0.0
    %661 = vmatprep.subr.mxu0 0.0
    %662 = vmatpush1.msra.mxu0 0.0
    %663 = vmatprep.subr.mxu0 0.0
    %664 = vmatpush1.msra.mxu0 0.0
    %665 = vmatprep.subr.mxu0 0.0
    %666 = vmatpush1.msra.mxu0 0.0
    %667 = vmatprep.subr.mxu0 0.0
    %668 = vmatpush1.msra.mxu0 0.0
    %669 = vmatprep.subr.mxu0 0.0
    %670 = vmatpush1.msra.mxu0 0.0
    %671 = vmatprep.subr.mxu0 0.0
    %672 = vmatpush1.msra.mxu0 0.0
    %673 = vmatprep.subr.mxu0 0.0
    %674 = vmatpush1.msra.mxu0 0.0
    %675 = vmatprep.subr.mxu0 0.0
    %676 = vmatpush1.msra.mxu0 0.0
    %677 = vmatprep.subr.mxu0 0.0
    %678 = vmatpush1.msra.mxu0 0.0
    %679 = vmatprep.subr.mxu0 0.0
    %680 = vmatpush1.msra.mxu0 0.0
    %681 = vmatprep.subr.mxu0 0.0
    %682 = vmatpush1.msra.mxu0 0.0
    %683 = vmatprep.subr.mxu0 0.0
    %684 = vmatpush1.msra.mxu0 0.0
    %685 = vmatprep.mubr.f32.mxu0 0.0
    %686 = vmatmul.mubr.f32.gmra.mrb[0].mxu0 %v619
    %v687 = vpop.f32.mrb[0].mxu0
    %v688 = vadd.f32 %v149, %v687
    %v689 = vpop.f32.mrb[0].mxu0
    %690 = vdwg.mxu0
    %v692 = vsel %vm48, %v537, 0
    %694 = vmatprep.subr.mxu0 0.0
    %695 = vmatpush1.msra.mxu0 %v224
    %696 = vmatprep.subr.mxu0 0.0
    %697 = vmatpush1.msra.mxu0 %v226
    %698 = vmatprep.subr.mxu0 0.0
    %699 = vmatpush1.msra.mxu0 %v228
    %700 = vmatprep.subr.mxu0 0.0
    %701 = vmatpush1.msra.mxu0 %v230
    %702 = vmatprep.subr.mxu0 0.0
    %703 = vmatpush1.msra.mxu0 0.0
    %704 = vmatprep.subr.mxu0 0.0
    %705 = vmatpush1.msra.mxu0 0.0
    %706 = vmatprep.subr.mxu0 0.0
    %707 = vmatpush1.msra.mxu0 0.0
    %708 = vmatprep.subr.mxu0 0.0
    %709 = vmatpush1.msra.mxu0 0.0
    %710 = vmatprep.subr.mxu0 0.0
    %711 = vmatpush1.msra.mxu0 0.0
    %712 = vmatprep.subr.mxu0 0.0
    %713 = vmatpush1.msra.mxu0 0.0
    %714 = vmatprep.subr.mxu0 0.0
    %715 = vmatpush1.msra.mxu0 0.0
    %716 = vmatprep.subr.mxu0 0.0
    %717 = vmatpush1.msra.mxu0 0.0
    %718 = vmatprep.subr.mxu0 0.0
    %719 = vmatpush1.msra.mxu0 0.0
    %720 = vmatprep.subr.mxu0 0.0
    %721 = vmatpush1.msra.mxu0 0.0
    %722 = vmatprep.subr.mxu0 0.0
    %723 = vmatpush1.msra.mxu0 0.0
    %724 = vmatprep.subr.mxu0 0.0
    %725 = vmatpush1.msra.mxu0 0.0
    %726 = vmatprep.subr.mxu0 0.0
    %727 = vmatpush1.msra.mxu0 0.0
    %728 = vmatprep.subr.mxu0 0.0
    %729 = vmatpush1.msra.mxu0 0.0
    %730 = vmatprep.subr.mxu0 0.0
    %731 = vmatpush1.msra.mxu0 0.0
    %732 = vmatprep.subr.mxu0 0.0
    %733 = vmatpush1.msra.mxu0 0.0
    %734 = vmatprep.subr.mxu0 0.0
    %735 = vmatpush1.msra.mxu0 0.0
    %736 = vmatprep.subr.mxu0 0.0
    %737 = vmatpush1.msra.mxu0 0.0
    %738 = vmatprep.subr.mxu0 0.0
    %739 = vmatpush1.msra.mxu0 0.0
    %740 = vmatprep.subr.mxu0 0.0
    %741 = vmatpush1.msra.mxu0 0.0
    %742 = vmatprep.subr.mxu0 0.0
    %743 = vmatpush1.msra.mxu0 0.0
    %744 = vmatprep.subr.mxu0 0.0
    %745 = vmatpush1.msra.mxu0 0.0
    %746 = vmatprep.subr.mxu0 0.0
    %747 = vmatpush1.msra.mxu0 0.0
    %748 = vmatprep.subr.mxu0 0.0
    %749 = vmatpush1.msra.mxu0 0.0
    %750 = vmatprep.subr.mxu0 0.0
    %751 = vmatpush1.msra.mxu0 0.0
    %752 = vmatprep.subr.mxu0 0.0
    %753 = vmatpush1.msra.mxu0 0.0
    %754 = vmatprep.subr.mxu0 0.0
    %755 = vmatpush1.msra.mxu0 0.0
    %756 = vmatprep.subr.mxu0 0.0
    %757 = vmatpush1.msra.mxu0 0.0
    %758 = vmatprep.mubr.f32.mxu0 0.0
    %759 = vmatmul.mubr.f32.gmra.mrb[0].mxu0 %v692
    %v760 = vpop.f32.mrb[0].mxu0
    %v761 = vadd.f32 0.0, %v760
    %v762 = vpop.f32.mrb[0].mxu0
    %763 = vdwg.mxu0
    %v764 = vadd.f32 %v688, %v761
    %v765 = vtanh.pop %v764
    %766 = vmatprep.subr.mxu0 0.0
    %767 = vmatpush1.msra.mxu0 %v14
    %768 = vmatprep.subr.mxu0 0.0
    %769 = vmatpush1.msra.mxu0 %v15
    %770 = vmatprep.subr.mxu0 0.0
    %771 = vmatpush1.msra.mxu0 %v16
    %772 = vmatprep.subr.mxu0 0.0
    %773 = vmatpush1.msra.mxu0 %v17
    %774 = vmatprep.subr.mxu0 0.0
    %775 = vmatpush1.msra.mxu0 0.0
    %776 = vmatprep.subr.mxu0 0.0
    %777 = vmatpush1.msra.mxu0 0.0
    %778 = vmatprep.subr.mxu0 0.0
    %779 = vmatpush1.msra.mxu0 0.0
    %780 = vmatprep.subr.mxu0 0.0
    %781 = vmatpush1.msra.mxu0 0.0
    %782 = vmatprep.subr.mxu0 0.0
    %783 = vmatpush1.msra.mxu0 0.0
    %784 = vmatprep.subr.mxu0 0.0
    %785 = vmatpush1.msra.mxu0 0.0
    %786 = vmatprep.subr.mxu0 0.0
    %787 = vmatpush1.msra.mxu0 0.0
    %788 = vmatprep.subr.mxu0 0.0
    %789 = vmatpush1.msra.mxu0 0.0
    %790 = vmatprep.subr.mxu0 0.0
    %791 = vmatpush1.msra.mxu0 0.0
    %792 = vmatprep.subr.mxu0 0.0
    %793 = vmatpush1.msra.mxu0 0.0
    %794 = vmatprep.subr.mxu0 0.0
    %795 = vmatpush1.msra.mxu0 0.0
    %796 = vmatprep.subr.mxu0 0.0
    %797 = vmatpush1.msra.mxu0 0.0
    %798 = vmatprep.subr.mxu0 0.0
    %799 = vmatpush1.msra.mxu0 0.0
    %800 = vmatprep.subr.mxu0 0.0
    %801 = vmatpush1.msra.mxu0 0.0
    %802 = vmatprep.subr.mxu0 0.0
    %803 = vmatpush1.msra.mxu0 0.0
    %804 = vmatprep.subr.mxu0 0.0
    %805 = vmatpush1.msra.mxu0 0.0
    %806 = vmatprep.subr.mxu0 0.0
    %807 = vmatpush1.msra.mxu0 0.0
    %808 = vmatprep.subr.mxu0 0.0
    %809 = vmatpush1.msra.mxu0 0.0
    %810 = vmatprep.subr.mxu0 0.0
    %811 = vmatpush1.msra.mxu0 0.0
    %812 = vmatprep.subr.mxu0 0.0
    %813 = vmatpush1.msra.mxu0 0.0
    %814 = vmatprep.subr.mxu0 0.0
    %815 = vmatpush1.msra.mxu0 0.0
    %816 = vmatprep.subr.mxu0 0.0
    %817 = vmatpush1.msra.mxu0 0.0
    %818 = vmatprep.subr.mxu0 0.0
    %819 = vmatpush1.msra.mxu0 0.0
    %820 = vmatprep.subr.mxu0 0.0
    %821 = vmatpush1.msra.mxu0 0.0
    %822 = vmatprep.subr.mxu0 0.0
    %823 = vmatpush1.msra.mxu0 0.0
    %824 = vmatprep.subr.mxu0 0.0
    %825 = vmatpush1.msra.mxu0 0.0
    %826 = vmatprep.subr.mxu0 0.0
    %827 = vmatpush1.msra.mxu0 0.0
    %828 = vmatprep.subr.mxu0 0.0
    %829 = vmatpush1.msra.mxu0 0.0
    %830 = vmatprep.mubr.f32.mxu0 0.0
    %831 = vmatmul.mubr.f32.gmra.mrb[0].mxu0 %v619
    %v832 = vpop.f32.mrb[0].mxu0
    %v833 = vadd.f32 0.0, %v832
    %v834 = vpop.f32.mrb[0].mxu0
    %835 = vdwg.mxu0
    %v837 = vrot.slane %v833, 5
    %838 = vrot.lane.b32.xlu0 %v837, 64
    %v839 = vpop.permute.xlu0 %838
    %v841 = vadd.f32 %v45, %v839
    %v842 = vtanh.pop %v841
    %v844 = vrot.slane %v842, 3
    %845 = vrot.lane.b32.xlu0 %v844, 64
    %v846 = vpop.permute.xlu0 %845
    %v847 = vsel %vm48, %v846, 0
    %849 = vmatprep.subr.mxu0 0.0
    %850 = vmatpush1.msra.mxu0 %v136
    %851 = vmatprep.subr.mxu0 0.0
    %852 = vmatpush1.msra.mxu0 %v138
    %853 = vmatprep.subr.mxu0 0.0
    %854 = vmatpush1.msra.mxu0 %v140
    %855 = vmatprep.subr.mxu0 0.0
    %856 = vmatpush1.msra.mxu0 %v142
    %857 = vmatprep.subr.mxu0 0.0
    %858 = vmatpush1.msra.mxu0 0.0
    %859 = vmatprep.subr.mxu0 0.0
    %860 = vmatpush1.msra.mxu0 0.0
    %861 = vmatprep.subr.mxu0 0.0
    %862 = vmatpush1.msra.mxu0 0.0
    %863 = vmatprep.subr.mxu0 0.0
    %864 = vmatpush1.msra.mxu0 0.0
    %865 = vmatprep.subr.mxu0 0.0
    %866 = vmatpush1.msra.mxu0 0.0
    %867 = vmatprep.subr.mxu0 0.0
    %868 = vmatpush1.msra.mxu0 0.0
    %869 = vmatprep.subr.mxu0 0.0
    %870 = vmatpush1.msra.mxu0 0.0
    %871 = vmatprep.subr.mxu0 0.0
    %872 = vmatpush1.msra.mxu0 0.0
    %873 = vmatprep.subr.mxu0 0.0
    %874 = vmatpush1.msra.mxu0 0.0
    %875 = vmatprep.subr.mxu0 0.0
    %876 = vmatpush1.msra.mxu0 0.0
    %877 = vmatprep.subr.mxu0 0.0
    %878 = vmatpush1.msra.mxu0 0.0
    %879 = vmatprep.subr.mxu0 0.0
    %880 = vmatpush1.msra.mxu0 0.0
    %881 = vmatprep.subr.mxu0 0.0
    %882 = vmatpush1.msra.mxu0 0.0
    %883 = vmatprep.subr.mxu0 0.0
    %884 = vmatpush1.msra.mxu0 0.0
    %885 = vmatprep.subr.mxu0 0.0
    %886 = vmatpush1.msra.mxu0 0.0
    %887 = vmatprep.subr.mxu0 0.0
    %888 = vmatpush1.msra.mxu0 0.0
    %889 = vmatprep.subr.mxu0 0.0
    %890 = vmatpush1.msra.mxu0 0.0
    %891 = vmatprep.subr.mxu0 0.0
    %892 = vmatpush1.msra.mxu0 0.0
    %893 = vmatprep.subr.mxu0 0.0
    %894 = vmatpush1.msra.mxu0 0.0
    %895 = vmatprep.subr.mxu0 0.0
    %896 = vmatpush1.msra.mxu0 0.0
    %897 = vmatprep.subr.mxu0 0.0
    %898 = vmatpush1.msra.mxu0 0.0
    %899 = vmatprep.subr.mxu0 0.0
    %900 = vmatpush1.msra.mxu0 0.0
    %901 = vmatprep.subr.mxu0 0.0
    %902 = vmatpush1.msra.mxu0 0.0
    %903 = vmatprep.subr.mxu0 0.0
    %904 = vmatpush1.msra.mxu0 0.0
    %905 = vmatprep.subr.mxu0 0.0
    %906 = vmatpush1.msra.mxu0 0.0
    %907 = vmatprep.subr.mxu0 0.0
    %908 = vmatpush1.msra.mxu0 0.0
    %909 = vmatprep.subr.mxu0 0.0
    %910 = vmatpush1.msra.mxu0 0.0
    %911 = vmatprep.subr.mxu0 0.0
    %912 = vmatpush1.msra.mxu0 0.0
    %913 = vmatprep.mubr.f32.mxu0 0.0
    %914 = vmatmul.mubr.f32.gmra.mrb[0].mxu0 %v847
    %v915 = vpop.f32.mrb[0].mxu0
    %v916 = vadd.f32 %v149, %v915
    %v917 = vpop.f32.mrb[0].mxu0
    %918 = vdwg.mxu0
    %v920 = vsel %vm48, %v765, 0
    %922 = vmatprep.subr.mxu0 0.0
    %923 = vmatpush1.msra.mxu0 %v224
    %924 = vmatprep.subr.mxu0 0.0
    %925 = vmatpush1.msra.mxu0 %v226
    %926 = vmatprep.subr.mxu0 0.0
    %927 = vmatpush1.msra.mxu0 %v228
    %928 = vmatprep.subr.mxu0 0.0
    %929 = vmatpush1.msra.mxu0 %v230
    %930 = vmatprep.subr.mxu0 0.0
    %931 = vmatpush1.msra.mxu0 0.0
    %932 = vmatprep.subr.mxu0 0.0
    %933 = vmatpush1.msra.mxu0 0.0
    %934 = vmatprep.subr.mxu0 0.0
    %935 = vmatpush1.msra.mxu0 0.0
    %936 = vmatprep.subr.mxu0 0.0
    %937 = vmatpush1.msra.mxu0 0.0
    %938 = vmatprep.subr.mxu0 0.0
    %939 = vmatpush1.msra.mxu0 0.0
    %940 = vmatprep.subr.mxu0 0.0
    %941 = vmatpush1.msra.mxu0 0.0
    %942 = vmatprep.subr.mxu0 0.0
    %943 = vmatpush1.msra.mxu0 0.0
    %944 = vmatprep.subr.mxu0 0.0
    %945 = vmatpush1.msra.mxu0 0.0
    %946 = vmatprep.subr.mxu0 0.0
    %947 = vmatpush1.msra.mxu0 0.0
    %948 = vmatprep.subr.mxu0 0.0
    %949 = vmatpush1.msra.mxu0 0.0
    %950 = vmatprep.subr.mxu0 0.0
    %951 = vmatpush1.msra.mxu0 0.0
    %952 = vmatprep.subr.mxu0 0.0
    %953 = vmatpush1.msra.mxu0 0.0
    %954 = vmatprep.subr.mxu0 0.0
    %955 = vmatpush1.msra.mxu0 0.0
    %956 = vmatprep.subr.mxu0 0.0
    %957 = vmatpush1.msra.mxu0 0.0
    %958 = vmatprep.subr.mxu0 0.0
    %959 = vmatpush1.msra.mxu0 0.0
    %960 = vmatprep.subr.mxu0 0.0
    %961 = vmatpush1.msra.mxu0 0.0
    %962 = vmatprep.subr.mxu0 0.0
    %963 = vmatpush1.msra.mxu0 0.0
    %964 = vmatprep.subr.mxu0 0.0
    %965 = vmatpush1.msra.mxu0 0.0
    %966 = vmatprep.subr.mxu0 0.0
    %967 = vmatpush1.msra.mxu0 0.0
    %968 = vmatprep.subr.mxu0 0.0
    %969 = vmatpush1.msra.mxu0 0.0
    %970 = vmatprep.subr.mxu0 0.0
    %971 = vmatpush1.msra.mxu0 0.0
    %972 = vmatprep.subr.mxu0 0.0
    %973 = vmatpush1.msra.mxu0 0.0
    %974 = vmatprep.subr.mxu0 0.0
    %975 = vmatpush1.msra.mxu0 0.0
    %976 = vmatprep.subr.mxu0 0.0
    %977 = vmatpush1.msra.mxu0 0.0
    %978 = vmatprep.subr.mxu0 0.0
    %979 = vmatpush1.msra.mxu0 0.0
    %980 = vmatprep.subr.mxu0 0.0
    %981 = vmatpush1.msra.mxu0 0.0
    %982 = vmatprep.subr.mxu0 0.0
    %983 = vmatpush1.msra.mxu0 0.0
    %984 = vmatprep.subr.mxu0 0.0
    %985 = vmatpush1.msra.mxu0 0.0
    %986 = vmatprep.mubr.f32.mxu0 0.0
    %987 = vmatmul.mubr.f32.gmra.mrb[0].mxu0 %v920
    %v988 = vpop.f32.mrb[0].mxu0
    %v989 = vadd.f32 0.0, %v988
    %v990 = vpop.f32.mrb[0].mxu0
    %991 = vdwg.mxu0
    %v992 = vadd.f32 %v916, %v989
    %v993 = vtanh.pop %v992
    %994 = vmatprep.subr.mxu0 0.0
    %995 = vmatpush1.msra.mxu0 %v14
    %996 = vmatprep.subr.mxu0 0.0
    %997 = vmatpush1.msra.mxu0 %v15
    %998 = vmatprep.subr.mxu0 0.0
    %999 = vmatpush1.msra.mxu0 %v16
    %1000 = vmatprep.subr.mxu0 0.0
    %1001 = vmatpush1.msra.mxu0 %v17
    %1002 = vmatprep.subr.mxu0 0.0
    %1003 = vmatpush1.msra.mxu0 0.0
    %1004 = vmatprep.subr.mxu0 0.0
    %1005 = vmatpush1.msra.mxu0 0.0
    %1006 = vmatprep.subr.mxu0 0.0
    %1007 = vmatpush1.msra.mxu0 0.0
    %1008 = vmatprep.subr.mxu0 0.0
    %1009 = vmatpush1.msra.mxu0 0.0
    %1010 = vmatprep.subr.mxu0 0.0
    %1011 = vmatpush1.msra.mxu0 0.0
    %1012 = vmatprep.subr.mxu0 0.0
    %1013 = vmatpush1.msra.mxu0 0.0
    %1014 = vmatprep.subr.mxu0 0.0
    %1015 = vmatpush1.msra.mxu0 0.0
    %1016 = vmatprep.subr.mxu0 0.0
    %1017 = vmatpush1.msra.mxu0 0.0
    %1018 = vmatprep.subr.mxu0 0.0
    %1019 = vmatpush1.msra.mxu0 0.0
    %1020 = vmatprep.subr.mxu0 0.0
    %1021 = vmatpush1.msra.mxu0 0.0
    %1022 = vmatprep.subr.mxu0 0.0
    %1023 = vmatpush1.msra.mxu0 0.0
    %1024 = vmatprep.subr.mxu0 0.0
    %1025 = vmatpush1.msra.mxu0 0.0
    %1026 = vmatprep.subr.mxu0 0.0
    %1027 = vmatpush1.msra.mxu0 0.0
    %1028 = vmatprep.subr.mxu0 0.0
    %1029 = vmatpush1.msra.mxu0 0.0
    %1030 = vmatprep.subr.mxu0 0.0
    %1031 = vmatpush1.msra.mxu0 0.0
    %1032 = vmatprep.subr.mxu0 0.0
    %1033 = vmatpush1.msra.mxu0 0.0
    %1034 = vmatprep.subr.mxu0 0.0
    %1035 = vmatpush1.msra.mxu0 0.0
    %1036 = vmatprep.subr.mxu0 0.0
    %1037 = vmatpush1.msra.mxu0 0.0
    %1038 = vmatprep.subr.mxu0 0.0
    %1039 = vmatpush1.msra.mxu0 0.0
    %1040 = vmatprep.subr.mxu0 0.0
    %1041 = vmatpush1.msra.mxu0 0.0
    %1042 = vmatprep.subr.mxu0 0.0
    %1043 = vmatpush1.msra.mxu0 0.0
    %1044 = vmatprep.subr.mxu0 0.0
    %1045 = vmatpush1.msra.mxu0 0.0
    %1046 = vmatprep.subr.mxu0 0.0
    %1047 = vmatpush1.msra.mxu0 0.0
    %1048 = vmatprep.subr.mxu0 0.0
    %1049 = vmatpush1.msra.mxu0 0.0
    %1050 = vmatprep.subr.mxu0 0.0
    %1051 = vmatpush1.msra.mxu0 0.0
    %1052 = vmatprep.subr.mxu0 0.0
    %1053 = vmatpush1.msra.mxu0 0.0
    %1054 = vmatprep.subr.mxu0 0.0
    %1055 = vmatpush1.msra.mxu0 0.0
    %1056 = vmatprep.subr.mxu0 0.0
    %1057 = vmatpush1.msra.mxu0 0.0
    %1058 = vmatprep.mubr.f32.mxu0 0.0
    %1059 = vmatmul.mubr.f32.gmra.mrb[0].mxu0 %v847
    %v1060 = vpop.f32.mrb[0].mxu0
    %v1061 = vadd.f32 0.0, %v1060
    %v1062 = vpop.f32.mrb[0].mxu0
    %1063 = vdwg.mxu0
    %v1065 = vrot.slane %v1061, 4
    %1066 = vrot.lane.b32.xlu0 %v1065, 64
    %v1067 = vpop.permute.xlu0 %1066
    %v1069 = vadd.f32 %v45, %v1067
    %v1070 = vtanh.pop %v1069
    %v1072 = vrot.slane %v1070, 4
    %1073 = vrot.lane.b32.xlu0 %v1072, 64
    %v1074 = vpop.permute.xlu0 %1073
    %v1075 = vsel %vm48, %v1074, 0
    %1077 = vmatprep.subr.mxu0 0.0
    %1078 = vmatpush1.msra.mxu0 %v136
    %1079 = vmatprep.subr.mxu0 0.0
    %1080 = vmatpush1.msra.mxu0 %v138
    %1081 = vmatprep.subr.mxu0 0.0
    %1082 = vmatpush1.msra.mxu0 %v140
    %1083 = vmatprep.subr.mxu0 0.0
    %1084 = vmatpush1.msra.mxu0 %v142
    %1085 = vmatprep.subr.mxu0 0.0
    %1086 = vmatpush1.msra.mxu0 0.0
    %1087 = vmatprep.subr.mxu0 0.0
    %1088 = vmatpush1.msra.mxu0 0.0
    %1089 = vmatprep.subr.mxu0 0.0
    %1090 = vmatpush1.msra.mxu0 0.0
    %1091 = vmatprep.subr.mxu0 0.0
    %1092 = vmatpush1.msra.mxu0 0.0
    %1093 = vmatprep.subr.mxu0 0.0
    %1094 = vmatpush1.msra.mxu0 0.0
    %1095 = vmatprep.subr.mxu0 0.0
    %1096 = vmatpush1.msra.mxu0 0.0
    %1097 = vmatprep.subr.mxu0 0.0
    %1098 = vmatpush1.msra.mxu0 0.0
    %1099 = vmatprep.subr.mxu0 0.0
    %1100 = vmatpush1.msra.mxu0 0.0
    %1101 = vmatprep.subr.mxu0 0.0
    %1102 = vmatpush1.msra.mxu0 0.0
    %1103 = vmatprep.subr.mxu0 0.0
    %1104 = vmatpush1.msra.mxu0 0.0
    %1105 = vmatprep.subr.mxu0 0.0
    %1106 = vmatpush1.msra.mxu0 0.0
    %1107 = vmatprep.subr.mxu0 0.0
    %1108 = vmatpush1.msra.mxu0 0.0
    %1109 = vmatprep.subr.mxu0 0.0
    %1110 = vmatpush1.msra.mxu0 0.0
    %1111 = vmatprep.subr.mxu0 0.0
    %1112 = vmatpush1.msra.mxu0 0.0
    %1113 = vmatprep.subr.mxu0 0.0
    %1114 = vmatpush1.msra.mxu0 0.0
    %1115 = vmatprep.subr.mxu0 0.0
    %1116 = vmatpush1.msra.mxu0 0.0
    %1117 = vmatprep.subr.mxu0 0.0
    %1118 = vmatpush1.msra.mxu0 0.0
    %1119 = vmatprep.subr.mxu0 0.0
    %1120 = vmatpush1.msra.mxu0 0.0
    %1121 = vmatprep.subr.mxu0 0.0
    %1122 = vmatpush1.msra.mxu0 0.0
    %1123 = vmatprep.subr.mxu0 0.0
    %1124 = vmatpush1.msra.mxu0 0.0
    %1125 = vmatprep.subr.mxu0 0.0
    %1126 = vmatpush1.msra.mxu0 0.0
    %1127 = vmatprep.subr.mxu0 0.0
    %1128 = vmatpush1.msra.mxu0 0.0
    %1129 = vmatprep.subr.mxu0 0.0
    %1130 = vmatpush1.msra.mxu0 0.0
    %1131 = vmatprep.subr.mxu0 0.0
    %1132 = vmatpush1.msra.mxu0 0.0
    %1133 = vmatprep.subr.mxu0 0.0
    %1134 = vmatpush1.msra.mxu0 0.0
    %1135 = vmatprep.subr.mxu0 0.0
    %1136 = vmatpush1.msra.mxu0 0.0
    %1137 = vmatprep.subr.mxu0 0.0
    %1138 = vmatpush1.msra.mxu0 0.0
    %1139 = vmatprep.subr.mxu0 0.0
    %1140 = vmatpush1.msra.mxu0 0.0
    %1141 = vmatprep.mubr.f32.mxu0 0.0
    %1142 = vmatmul.mubr.f32.gmra.mrb[0].mxu0 %v1075
    %v1143 = vpop.f32.mrb[0].mxu0
    %v1144 = vadd.f32 %v149, %v1143
    %v1145 = vpop.f32.mrb[0].mxu0
    %1146 = vdwg.mxu0
    %v1148 = vsel %vm48, %v993, 0
    %1150 = vmatprep.subr.mxu0 0.0
    %1151 = vmatpush1.msra.mxu0 %v224
    %1152 = vmatprep.subr.mxu0 0.0
    %1153 = vmatpush1.msra.mxu0 %v226
    %1154 = vmatprep.subr.mxu0 0.0
    %1155 = vmatpush1.msra.mxu0 %v228
    %1156 = vmatprep.subr.mxu0 0.0
    %1157 = vmatpush1.msra.mxu0 %v230
    %1158 = vmatprep.subr.mxu0 0.0
    %1159 = vmatpush1.msra.mxu0 0.0
    %1160 = vmatprep.subr.mxu0 0.0
    %1161 = vmatpush1.msra.mxu0 0.0
    %1162 = vmatprep.subr.mxu0 0.0
    %1163 = vmatpush1.msra.mxu0 0.0
    %1164 = vmatprep.subr.mxu0 0.0
    %1165 = vmatpush1.msra.mxu0 0.0
    %1166 = vmatprep.subr.mxu0 0.0
    %1167 = vmatpush1.msra.mxu0 0.0
    %1168 = vmatprep.subr.mxu0 0.0
    %1169 = vmatpush1.msra.mxu0 0.0
    %1170 = vmatprep.subr.mxu0 0.0
    %1171 = vmatpush1.msra.mxu0 0.0
    %1172 = vmatprep.subr.mxu0 0.0
    %1173 = vmatpush1.msra.mxu0 0.0
    %1174 = vmatprep.subr.mxu0 0.0
    %1175 = vmatpush1.msra.mxu0 0.0
    %1176 = vmatprep.subr.mxu0 0.0
    %1177 = vmatpush1.msra.mxu0 0.0
    %1178 = vmatprep.subr.mxu0 0.0
    %1179 = vmatpush1.msra.mxu0 0.0
    %1180 = vmatprep.subr.mxu0 0.0
    %1181 = vmatpush1.msra.mxu0 0.0
    %1182 = vmatprep.subr.mxu0 0.0
    %1183 = vmatpush1.msra.mxu0 0.0
    %1184 = vmatprep.subr.mxu0 0.0
    %1185 = vmatpush1.msra.mxu0 0.0
    %1186 = vmatprep.subr.mxu0 0.0
    %1187 = vmatpush1.msra.mxu0 0.0
    %1188 = vmatprep.subr.mxu0 0.0
    %1189 = vmatpush1.msra.mxu0 0.0
    %1190 = vmatprep.subr.mxu0 0.0
    %1191 = vmatpush1.msra.mxu0 0.0
    %1192 = vmatprep.subr.mxu0 0.0
    %1193 = vmatpush1.msra.mxu0 0.0
    %1194 = vmatprep.subr.mxu0 0.0
    %1195 = vmatpush1.msra.mxu0 0.0
    %1196 = vmatprep.subr.mxu0 0.0
    %1197 = vmatpush1.msra.mxu0 0.0
    %1198 = vmatprep.subr.mxu0 0.0
    %1199 = vmatpush1.msra.mxu0 0.0
    %1200 = vmatprep.subr.mxu0 0.0
    %1201 = vmatpush1.msra.mxu0 0.0
    %1202 = vmatprep.subr.mxu0 0.0
    %1203 = vmatpush1.msra.mxu0 0.0
    %1204 = vmatprep.subr.mxu0 0.0
    %1205 = vmatpush1.msra.mxu0 0.0
    %1206 = vmatprep.subr.mxu0 0.0
    %1207 = vmatpush1.msra.mxu0 0.0
    %1208 = vmatprep.subr.mxu0 0.0
    %1209 = vmatpush1.msra.mxu0 0.0
    %1210 = vmatprep.subr.mxu0 0.0
    %1211 = vmatpush1.msra.mxu0 0.0
    %1212 = vmatprep.subr.mxu0 0.0
    %1213 = vmatpush1.msra.mxu0 0.0
    %1214 = vmatprep.mubr.f32.mxu0 0.0
    %1215 = vmatmul.mubr.f32.gmra.mrb[0].mxu0 %v1148
    %v1216 = vpop.f32.mrb[0].mxu0
    %v1217 = vadd.f32 0.0, %v1216
    %v1218 = vpop.f32.mrb[0].mxu0
    %1219 = vdwg.mxu0
    %v1220 = vadd.f32 %v1144, %v1217
    %v1221 = vtanh.pop %v1220
    %1222 = vmatprep.subr.mxu0 0.0
    %1223 = vmatpush1.msra.mxu0 %v14
    %1224 = vmatprep.subr.mxu0 0.0
    %1225 = vmatpush1.msra.mxu0 %v15
    %1226 = vmatprep.subr.mxu0 0.0
    %1227 = vmatpush1.msra.mxu0 %v16
    %1228 = vmatprep.subr.mxu0 0.0
    %1229 = vmatpush1.msra.mxu0 %v17
    %1230 = vmatprep.subr.mxu0 0.0
    %1231 = vmatpush1.msra.mxu0 0.0
    %1232 = vmatprep.subr.mxu0 0.0
    %1233 = vmatpush1.msra.mxu0 0.0
    %1234 = vmatprep.subr.mxu0 0.0
    %1235 = vmatpush1.msra.mxu0 0.0
    %1236 = vmatprep.subr.mxu0 0.0
    %1237 = vmatpush1.msra.mxu0 0.0
    %1238 = vmatprep.subr.mxu0 0.0
    %1239 = vmatpush1.msra.mxu0 0.0
    %1240 = vmatprep.subr.mxu0 0.0
    %1241 = vmatpush1.msra.mxu0 0.0
    %1242 = vmatprep.subr.mxu0 0.0
    %1243 = vmatpush1.msra.mxu0 0.0
    %1244 = vmatprep.subr.mxu0 0.0
    %1245 = vmatpush1.msra.mxu0 0.0
    %1246 = vmatprep.subr.mxu0 0.0
    %1247 = vmatpush1.msra.mxu0 0.0
    %1248 = vmatprep.subr.mxu0 0.0
    %1249 = vmatpush1.msra.mxu0 0.0
    %1250 = vmatprep.subr.mxu0 0.0
    %1251 = vmatpush1.msra.mxu0 0.0
    %1252 = vmatprep.subr.mxu0 0.0
    %1253 = vmatpush1.msra.mxu0 0.0
    %1254 = vmatprep.subr.mxu0 0.0
    %1255 = vmatpush1.msra.mxu0 0.0
    %1256 = vmatprep.subr.mxu0 0.0
    %1257 = vmatpush1.msra.mxu0 0.0
    %1258 = vmatprep.subr.mxu0 0.0
    %1259 = vmatpush1.msra.mxu0 0.0
    %1260 = vmatprep.subr.mxu0 0.0
    %1261 = vmatpush1.msra.mxu0 0.0
    %1262 = vmatprep.subr.mxu0 0.0
    %1263 = vmatpush1.msra.mxu0 0.0
    %1264 = vmatprep.subr.mxu0 0.0
    %1265 = vmatpush1.msra.mxu0 0.0
    %1266 = vmatprep.subr.mxu0 0.0
    %1267 = vmatpush1.msra.mxu0 0.0
    %1268 = vmatprep.subr.mxu0 0.0
    %1269 = vmatpush1.msra.mxu0 0.0
    %1270 = vmatprep.subr.mxu0 0.0
    %1271 = vmatpush1.msra.mxu0 0.0
    %1272 = vmatprep.subr.mxu0 0.0
    %1273 = vmatpush1.msra.mxu0 0.0
    %1274 = vmatprep.subr.mxu0 0.0
    %1275 = vmatpush1.msra.mxu0 0.0
    %1276 = vmatprep.subr.mxu0 0.0
    %1277 = vmatpush1.msra.mxu0 0.0
    %1278 = vmatprep.subr.mxu0 0.0
    %1279 = vmatpush1.msra.mxu0 0.0
    %1280 = vmatprep.subr.mxu0 0.0
    %1281 = vmatpush1.msra.mxu0 0.0
    %1282 = vmatprep.subr.mxu0 0.0
    %1283 = vmatpush1.msra.mxu0 0.0
    %1284 = vmatprep.subr.mxu0 0.0
    %1285 = vmatpush1.msra.mxu0 0.0
    %1286 = vmatprep.mubr.f32.mxu0 0.0
    %1287 = vmatmul.mubr.f32.gmra.mrb[0].mxu0 %v1075
    %v1288 = vpop.f32.mrb[0].mxu0
    %v1289 = vadd.f32 0.0, %v1288
    %v1290 = vpop.f32.mrb[0].mxu0
    %1291 = vdwg.mxu0
    %v1293 = vrot.slane %v1289, 3
    %1294 = vrot.lane.b32.xlu0 %v1293, 64
    %v1295 = vpop.permute.xlu0 %1294
    %v1297 = vadd.f32 %v45, %v1295
    %v1298 = vtanh.pop %v1297
    %v1300 = vrot.slane %v1298, 5
    %1301 = vrot.lane.b32.xlu0 %v1300, 64
    %v1302 = vpop.permute.xlu0 %1301
    %v1303 = vsel %vm48, %v1302, 0
    %1305 = vmatprep.subr.mxu0 0.0
    %1306 = vmatpush1.msra.mxu0 %v136
    %1307 = vmatprep.subr.mxu0 0.0
    %1308 = vmatpush1.msra.mxu0 %v138
    %1309 = vmatprep.subr.mxu0 0.0
    %1310 = vmatpush1.msra.mxu0 %v140
    %1311 = vmatprep.subr.mxu0 0.0
    %1312 = vmatpush1.msra.mxu0 %v142
    %1313 = vmatprep.subr.mxu0 0.0
    %1314 = vmatpush1.msra.mxu0 0.0
    %1315 = vmatprep.subr.mxu0 0.0
    %1316 = vmatpush1.msra.mxu0 0.0
    %1317 = vmatprep.subr.mxu0 0.0
    %1318 = vmatpush1.msra.mxu0 0.0
    %1319 = vmatprep.subr.mxu0 0.0
    %1320 = vmatpush1.msra.mxu0 0.0
    %1321 = vmatprep.subr.mxu0 0.0
    %1322 = vmatpush1.msra.mxu0 0.0
    %1323 = vmatprep.subr.mxu0 0.0
    %1324 = vmatpush1.msra.mxu0 0.0
    %1325 = vmatprep.subr.mxu0 0.0
    %1326 = vmatpush1.msra.mxu0 0.0
    %1327 = vmatprep.subr.mxu0 0.0
    %1328 = vmatpush1.msra.mxu0 0.0
    %1329 = vmatprep.subr.mxu0 0.0
    %1330 = vmatpush1.msra.mxu0 0.0
    %1331 = vmatprep.subr.mxu0 0.0
    %1332 = vmatpush1.msra.mxu0 0.0
    %1333 = vmatprep.subr.mxu0 0.0
    %1334 = vmatpush1.msra.mxu0 0.0
    %1335 = vmatprep.subr.mxu0 0.0
    %1336 = vmatpush1.msra.mxu0 0.0
    %1337 = vmatprep.subr.mxu0 0.0
    %1338 = vmatpush1.msra.mxu0 0.0
    %1339 = vmatprep.subr.mxu0 0.0
    %1340 = vmatpush1.msra.mxu0 0.0
    %1341 = vmatprep.subr.mxu0 0.0
    %1342 = vmatpush1.msra.mxu0 0.0
    %1343 = vmatprep.subr.mxu0 0.0
    %1344 = vmatpush1.msra.mxu0 0.0
    %1345 = vmatprep.subr.mxu0 0.0
    %1346 = vmatpush1.msra.mxu0 0.0
    %1347 = vmatprep.subr.mxu0 0.0
    %1348 = vmatpush1.msra.mxu0 0.0
    %1349 = vmatprep.subr.mxu0 0.0
    %1350 = vmatpush1.msra.mxu0 0.0
    %1351 = vmatprep.subr.mxu0 0.0
    %1352 = vmatpush1.msra.mxu0 0.0
    %1353 = vmatprep.subr.mxu0 0.0
    %1354 = vmatpush1.msra.mxu0 0.0
    %1355 = vmatprep.subr.mxu0 0.0
    %1356 = vmatpush1.msra.mxu0 0.0
    %1357 = vmatprep.subr.mxu0 0.0
    %1358 = vmatpush1.msra.mxu0 0.0
    %1359 = vmatprep.subr.mxu0 0.0
    %1360 = vmatpush1.msra.mxu0 0.0
    %1361 = vmatprep.subr.mxu0 0.0
    %1362 = vmatpush1.msra.mxu0 0.0
    %1363 = vmatprep.subr.mxu0 0.0
    %1364 = vmatpush1.msra.mxu0 0.0
    %1365 = vmatprep.subr.mxu0 0.0
    %1366 = vmatpush1.msra.mxu0 0.0
    %1367 = vmatprep.subr.mxu0 0.0
    %1368 = vmatpush1.msra.mxu0 0.0
    %1369 = vmatprep.mubr.f32.mxu0 0.0
    %1370 = vmatmul.mubr.f32.gmra.mrb[0].mxu0 %v1303
    %v1371 = vpop.f32.mrb[0].mxu0
    %v1372 = vadd.f32 %v149, %v1371
    %v1373 = vpop.f32.mrb[0].mxu0
    %1374 = vdwg.mxu0
    %v1376 = vsel %vm48, %v1221, 0
    %1378 = vmatprep.subr.mxu0 0.0
    %1379 = vmatpush1.msra.mxu0 %v224
    %1380 = vmatprep.subr.mxu0 0.0
    %1381 = vmatpush1.msra.mxu0 %v226
    %1382 = vmatprep.subr.mxu0 0.0
    %1383 = vmatpush1.msra.mxu0 %v228
    %1384 = vmatprep.subr.mxu0 0.0
    %1385 = vmatpush1.msra.mxu0 %v230
    %1386 = vmatprep.subr.mxu0 0.0
    %1387 = vmatpush1.msra.mxu0 0.0
    %1388 = vmatprep.subr.mxu0 0.0
    %1389 = vmatpush1.msra.mxu0 0.0
    %1390 = vmatprep.subr.mxu0 0.0
    %1391 = vmatpush1.msra.mxu0 0.0
    %1392 = vmatprep.subr.mxu0 0.0
    %1393 = vmatpush1.msra.mxu0 0.0
    %1394 = vmatprep.subr.mxu0 0.0
    %1395 = vmatpush1.msra.mxu0 0.0
    %1396 = vmatprep.subr.mxu0 0.0
    %1397 = vmatpush1.msra.mxu0 0.0
    %1398 = vmatprep.subr.mxu0 0.0
    %1399 = vmatpush1.msra.mxu0 0.0
    %1400 = vmatprep.subr.mxu0 0.0
    %1401 = vmatpush1.msra.mxu0 0.0
    %1402 = vmatprep.subr.mxu0 0.0
    %1403 = vmatpush1.msra.mxu0 0.0
    %1404 = vmatprep.subr.mxu0 0.0
    %1405 = vmatpush1.msra.mxu0 0.0
    %1406 = vmatprep.subr.mxu0 0.0
    %1407 = vmatpush1.msra.mxu0 0.0
    %1408 = vmatprep.subr.mxu0 0.0
    %1409 = vmatpush1.msra.mxu0 0.0
    %1410 = vmatprep.subr.mxu0 0.0
    %1411 = vmatpush1.msra.mxu0 0.0
    %1412 = vmatprep.subr.mxu0 0.0
    %1413 = vmatpush1.msra.mxu0 0.0
    %1414 = vmatprep.subr.mxu0 0.0
    %1415 = vmatpush1.msra.mxu0 0.0
    %1416 = vmatprep.subr.mxu0 0.0
    %1417 = vmatpush1.msra.mxu0 0.0
    %1418 = vmatprep.subr.mxu0 0.0
    %1419 = vmatpush1.msra.mxu0 0.0
    %1420 = vmatprep.subr.mxu0 0.0
    %1421 = vmatpush1.msra.mxu0 0.0
    %1422 = vmatprep.subr.mxu0 0.0
    %1423 = vmatpush1.msra.mxu0 0.0
    %1424 = vmatprep.subr.mxu0 0.0
    %1425 = vmatpush1.msra.mxu0 0.0
    %1426 = vmatprep.subr.mxu0 0.0
    %1427 = vmatpush1.msra.mxu0 0.0
    %1428 = vmatprep.subr.mxu0 0.0
    %1429 = vmatpush1.msra.mxu0 0.0
    %1430 = vmatprep.subr.mxu0 0.0
    %1431 = vmatpush1.msra.mxu0 0.0
    %1432 = vmatprep.subr.mxu0 0.0
    %1433 = vmatpush1.msra.mxu0 0.0
    %1434 = vmatprep.subr.mxu0 0.0
    %1435 = vmatpush1.msra.mxu0 0.0
    %1436 = vmatprep.subr.mxu0 0.0
    %1437 = vmatpush1.msra.mxu0 0.0
    %1438 = vmatprep.subr.mxu0 0.0
    %1439 = vmatpush1.msra.mxu0 0.0
    %1440 = vmatprep.subr.mxu0 0.0
    %1441 = vmatpush1.msra.mxu0 0.0
    %1442 = vmatprep.mubr.f32.mxu0 0.0
    %1443 = vmatmul.mubr.f32.gmra.mrb[0].mxu0 %v1376
    %v1444 = vpop.f32.mrb[0].mxu0
    %v1445 = vadd.f32 0.0, %v1444
    %v1446 = vpop.f32.mrb[0].mxu0
    %1447 = vdwg.mxu0
    %v1448 = vadd.f32 %v1372, %v1445
    %v1449 = vtanh.pop %v1448
    %1450 = vmatprep.subr.mxu0 0.0
    %1451 = vmatpush1.msra.mxu0 %v14
    %1452 = vmatprep.subr.mxu0 0.0
    %1453 = vmatpush1.msra.mxu0 %v15
    %1454 = vmatprep.subr.mxu0 0.0
    %1455 = vmatpush1.msra.mxu0 %v16
    %1456 = vmatprep.subr.mxu0 0.0
    %1457 = vmatpush1.msra.mxu0 %v17
    %1458 = vmatprep.subr.mxu0 0.0
    %1459 = vmatpush1.msra.mxu0 0.0
    %1460 = vmatprep.subr.mxu0 0.0
    %1461 = vmatpush1.msra.mxu0 0.0
    %1462 = vmatprep.subr.mxu0 0.0
    %1463 = vmatpush1.msra.mxu0 0.0
    %1464 = vmatprep.subr.mxu0 0.0
    %1465 = vmatpush1.msra.mxu0 0.0
    %1466 = vmatprep.subr.mxu0 0.0
    %1467 = vmatpush1.msra.mxu0 0.0
    %1468 = vmatprep.subr.mxu0 0.0
    %1469 = vmatpush1.msra.mxu0 0.0
    %1470 = vmatprep.subr.mxu0 0.0
    %1471 = vmatpush1.msra.mxu0 0.0
    %1472 = vmatprep.subr.mxu0 0.0
    %1473 = vmatpush1.msra.mxu0 0.0
    %1474 = vmatprep.subr.mxu0 0.0
    %1475 = vmatpush1.msra.mxu0 0.0
    %1476 = vmatprep.subr.mxu0 0.0
    %1477 = vmatpush1.msra.mxu0 0.0
    %1478 = vmatprep.subr.mxu0 0.0
    %1479 = vmatpush1.msra.mxu0 0.0
    %1480 = vmatprep.subr.mxu0 0.0
    %1481 = vmatpush1.msra.mxu0 0.0
    %1482 = vmatprep.subr.mxu0 0.0
    %1483 = vmatpush1.msra.mxu0 0.0
    %1484 = vmatprep.subr.mxu0 0.0
    %1485 = vmatpush1.msra.mxu0 0.0
    %1486 = vmatprep.subr.mxu0 0.0
    %1487 = vmatpush1.msra.mxu0 0.0
    %1488 = vmatprep.subr.mxu0 0.0
    %1489 = vmatpush1.msra.mxu0 0.0
    %1490 = vmatprep.subr.mxu0 0.0
    %1491 = vmatpush1.msra.mxu0 0.0
    %1492 = vmatprep.subr.mxu0 0.0
    %1493 = vmatpush1.msra.mxu0 0.0
    %1494 = vmatprep.subr.mxu0 0.0
    %1495 = vmatpush1.msra.mxu0 0.0
    %1496 = vmatprep.subr.mxu0 0.0
    %1497 = vmatpush1.msra.mxu0 0.0
    %1498 = vmatprep.subr.mxu0 0.0
    %1499 = vmatpush1.msra.mxu0 0.0
    %1500 = vmatprep.subr.mxu0 0.0
    %1501 = vmatpush1.msra.mxu0 0.0
    %1502 = vmatprep.subr.mxu0 0.0
    %1503 = vmatpush1.msra.mxu0 0.0
    %1504 = vmatprep.subr.mxu0 0.0
    %1505 = vmatpush1.msra.mxu0 0.0
    %1506 = vmatprep.subr.mxu0 0.0
    %1507 = vmatpush1.msra.mxu0 0.0
    %1508 = vmatprep.subr.mxu0 0.0
    %1509 = vmatpush1.msra.mxu0 0.0
    %1510 = vmatprep.subr.mxu0 0.0
    %1511 = vmatpush1.msra.mxu0 0.0
    %1512 = vmatprep.subr.mxu0 0.0
    %1513 = vmatpush1.msra.mxu0 0.0
    %1514 = vmatprep.mubr.f32.mxu0 0.0
    %1515 = vmatmul.mubr.f32.gmra.mrb[0].mxu0 %v1303
    %v1516 = vpop.f32.mrb[0].mxu0
    %v1517 = vadd.f32 0.0, %v1516
    %v1518 = vpop.f32.mrb[0].mxu0
    %1519 = vdwg.mxu0
    %v1521 = vrot.slane %v1517, 2
    %1522 = vrot.lane.b32.xlu0 %v1521, 64
    %v1523 = vpop.permute.xlu0 %1522
    %v1525 = vadd.f32 %v45, %v1523
    %v1526 = vtanh.pop %v1525
    %v1528 = vrot.slane %v1526, 6
    %1529 = vrot.lane.b32.xlu0 %v1528, 64
    %v1530 = vpop.permute.xlu0 %1529
    %v1531 = vsel %vm48, %v1530, 0
    %1533 = vmatprep.subr.mxu0 0.0
    %1534 = vmatpush1.msra.mxu0 %v136
    %1535 = vmatprep.subr.mxu0 0.0
    %1536 = vmatpush1.msra.mxu0 %v138
    %1537 = vmatprep.subr.mxu0 0.0
    %1538 = vmatpush1.msra.mxu0 %v140
    %1539 = vmatprep.subr.mxu0 0.0
    %1540 = vmatpush1.msra.mxu0 %v142
    %1541 = vmatprep.subr.mxu0 0.0
    %1542 = vmatpush1.msra.mxu0 0.0
    %1543 = vmatprep.subr.mxu0 0.0
    %1544 = vmatpush1.msra.mxu0 0.0
    %1545 = vmatprep.subr.mxu0 0.0
    %1546 = vmatpush1.msra.mxu0 0.0
    %1547 = vmatprep.subr.mxu0 0.0
    %1548 = vmatpush1.msra.mxu0 0.0
    %1549 = vmatprep.subr.mxu0 0.0
    %1550 = vmatpush1.msra.mxu0 0.0
    %1551 = vmatprep.subr.mxu0 0.0
    %1552 = vmatpush1.msra.mxu0 0.0
    %1553 = vmatprep.subr.mxu0 0.0
    %1554 = vmatpush1.msra.mxu0 0.0
    %1555 = vmatprep.subr.mxu0 0.0
    %1556 = vmatpush1.msra.mxu0 0.0
    %1557 = vmatprep.subr.mxu0 0.0
    %1558 = vmatpush1.msra.mxu0 0.0
    %1559 = vmatprep.subr.mxu0 0.0
    %1560 = vmatpush1.msra.mxu0 0.0
    %1561 = vmatprep.subr.mxu0 0.0
    %1562 = vmatpush1.msra.mxu0 0.0
    %1563 = vmatprep.subr.mxu0 0.0
    %1564 = vmatpush1.msra.mxu0 0.0
    %1565 = vmatprep.subr.mxu0 0.0
    %1566 = vmatpush1.msra.mxu0 0.0
    %1567 = vmatprep.subr.mxu0 0.0
    %1568 = vmatpush1.msra.mxu0 0.0
    %1569 = vmatprep.subr.mxu0 0.0
    %1570 = vmatpush1.msra.mxu0 0.0
    %1571 = vmatprep.subr.mxu0 0.0
    %1572 = vmatpush1.msra.mxu0 0.0
    %1573 = vmatprep.subr.mxu0 0.0
    %1574 = vmatpush1.msra.mxu0 0.0
    %1575 = vmatprep.subr.mxu0 0.0
    %1576 = vmatpush1.msra.mxu0 0.0
    %1577 = vmatprep.subr.mxu0 0.0
    %1578 = vmatpush1.msra.mxu0 0.0
    %1579 = vmatprep.subr.mxu0 0.0
    %1580 = vmatpush1.msra.mxu0 0.0
    %1581 = vmatprep.subr.mxu0 0.0
    %1582 = vmatpush1.msra.mxu0 0.0
    %1583 = vmatprep.subr.mxu0 0.0
    %1584 = vmatpush1.msra.mxu0 0.0
    %1585 = vmatprep.subr.mxu0 0.0
    %1586 = vmatpush1.msra.mxu0 0.0
    %1587 = vmatprep.subr.mxu0 0.0
    %1588 = vmatpush1.msra.mxu0 0.0
    %1589 = vmatprep.subr.mxu0 0.0
    %1590 = vmatpush1.msra.mxu0 0.0
    %1591 = vmatprep.subr.mxu0 0.0
    %1592 = vmatpush1.msra.mxu0 0.0
    %1593 = vmatprep.subr.mxu0 0.0
    %1594 = vmatpush1.msra.mxu0 0.0
    %1595 = vmatprep.subr.mxu0 0.0
    %1596 = vmatpush1.msra.mxu0 0.0
    %1597 = vmatprep.mubr.f32.mxu0 0.0
    %1598 = vmatmul.mubr.f32.gmra.mrb[0].mxu0 %v1531
    %v1599 = vpop.f32.mrb[0].mxu0
    %v1600 = vadd.f32 %v149, %v1599
    %v1601 = vpop.f32.mrb[0].mxu0
    %1602 = vdwg.mxu0
    %v1604 = vsel %vm48, %v1449, 0
    %1606 = vmatprep.subr.mxu0 0.0
    %1607 = vmatpush1.msra.mxu0 %v224
    %1608 = vmatprep.subr.mxu0 0.0
    %1609 = vmatpush1.msra.mxu0 %v226
    %1610 = vmatprep.subr.mxu0 0.0
    %1611 = vmatpush1.msra.mxu0 %v228
    %1612 = vmatprep.subr.mxu0 0.0
    %1613 = vmatpush1.msra.mxu0 %v230
    %1614 = vmatprep.subr.mxu0 0.0
    %1615 = vmatpush1.msra.mxu0 0.0
    %1616 = vmatprep.subr.mxu0 0.0
    %1617 = vmatpush1.msra.mxu0 0.0
    %1618 = vmatprep.subr.mxu0 0.0
    %1619 = vmatpush1.msra.mxu0 0.0
    %1620 = vmatprep.subr.mxu0 0.0
    %1621 = vmatpush1.msra.mxu0 0.0
    %1622 = vmatprep.subr.mxu0 0.0
    %1623 = vmatpush1.msra.mxu0 0.0
    %1624 = vmatprep.subr.mxu0 0.0
    %1625 = vmatpush1.msra.mxu0 0.0
    %1626 = vmatprep.subr.mxu0 0.0
    %1627 = vmatpush1.msra.mxu0 0.0
    %1628 = vmatprep.subr.mxu0 0.0
    %1629 = vmatpush1.msra.mxu0 0.0
    %1630 = vmatprep.subr.mxu0 0.0
    %1631 = vmatpush1.msra.mxu0 0.0
    %1632 = vmatprep.subr.mxu0 0.0
    %1633 = vmatpush1.msra.mxu0 0.0
    %1634 = vmatprep.subr.mxu0 0.0
    %1635 = vmatpush1.msra.mxu0 0.0
    %1636 = vmatprep.subr.mxu0 0.0
    %1637 = vmatpush1.msra.mxu0 0.0
    %1638 = vmatprep.subr.mxu0 0.0
    %1639 = vmatpush1.msra.mxu0 0.0
    %1640 = vmatprep.subr.mxu0 0.0
    %1641 = vmatpush1.msra.mxu0 0.0
    %1642 = vmatprep.subr.mxu0 0.0
    %1643 = vmatpush1.msra.mxu0 0.0
    %1644 = vmatprep.subr.mxu0 0.0
    %1645 = vmatpush1.msra.mxu0 0.0
    %1646 = vmatprep.subr.mxu0 0.0
    %1647 = vmatpush1.msra.mxu0 0.0
    %1648 = vmatprep.subr.mxu0 0.0
    %1649 = vmatpush1.msra.mxu0 0.0
    %1650 = vmatprep.subr.mxu0 0.0
    %1651 = vmatpush1.msra.mxu0 0.0
    %1652 = vmatprep.subr.mxu0 0.0
    %1653 = vmatpush1.msra.mxu0 0.0
    %1654 = vmatprep.subr.mxu0 0.0
    %1655 = vmatpush1.msra.mxu0 0.0
    %1656 = vmatprep.subr.mxu0 0.0
    %1657 = vmatpush1.msra.mxu0 0.0
    %1658 = vmatprep.subr.mxu0 0.0
    %1659 = vmatpush1.msra.mxu0 0.0
    %1660 = vmatprep.subr.mxu0 0.0
    %1661 = vmatpush1.msra.mxu0 0.0
    %1662 = vmatprep.subr.mxu0 0.0
    %1663 = vmatpush1.msra.mxu0 0.0
    %1664 = vmatprep.subr.mxu0 0.0
    %1665 = vmatpush1.msra.mxu0 0.0
    %1666 = vmatprep.subr.mxu0 0.0
    %1667 = vmatpush1.msra.mxu0 0.0
    %1668 = vmatprep.subr.mxu0 0.0
    %1669 = vmatpush1.msra.mxu0 0.0
    %1670 = vmatprep.mubr.f32.mxu0 0.0
    %1671 = vmatmul.mubr.f32.gmra.mrb[0].mxu0 %v1604
    %v1672 = vpop.f32.mrb[0].mxu0
    %v1673 = vadd.f32 0.0, %v1672
    %v1674 = vpop.f32.mrb[0].mxu0
    %1675 = vdwg.mxu0
    %v1676 = vadd.f32 %v1600, %v1673
    %v1677 = vtanh.pop %v1676
    %1678 = vmatprep.subr.mxu0 0.0
    %1679 = vmatpush1.msra.mxu0 %v14
    %1680 = vmatprep.subr.mxu0 0.0
    %1681 = vmatpush1.msra.mxu0 %v15
    %1682 = vmatprep.subr.mxu0 0.0
    %1683 = vmatpush1.msra.mxu0 %v16
    %1684 = vmatprep.subr.mxu0 0.0
    %1685 = vmatpush1.msra.mxu0 %v17
    %1686 = vmatprep.subr.mxu0 0.0
    %1687 = vmatpush1.msra.mxu0 0.0
    %1688 = vmatprep.subr.mxu0 0.0
    %1689 = vmatpush1.msra.mxu0 0.0
    %1690 = vmatprep.subr.mxu0 0.0
    %1691 = vmatpush1.msra.mxu0 0.0
    %1692 = vmatprep.subr.mxu0 0.0
    %1693 = vmatpush1.msra.mxu0 0.0
    %1694 = vmatprep.subr.mxu0 0.0
    %1695 = vmatpush1.msra.mxu0 0.0
    %1696 = vmatprep.subr.mxu0 0.0
    %1697 = vmatpush1.msra.mxu0 0.0
    %1698 = vmatprep.subr.mxu0 0.0
    %1699 = vmatpush1.msra.mxu0 0.0
    %1700 = vmatprep.subr.mxu0 0.0
    %1701 = vmatpush1.msra.mxu0 0.0
    %1702 = vmatprep.subr.mxu0 0.0
    %1703 = vmatpush1.msra.mxu0 0.0
    %1704 = vmatprep.subr.mxu0 0.0
    %1705 = vmatpush1.msra.mxu0 0.0
    %1706 = vmatprep.subr.mxu0 0.0
    %1707 = vmatpush1.msra.mxu0 0.0
    %1708 = vmatprep.subr.mxu0 0.0
    %1709 = vmatpush1.msra.mxu0 0.0
    %1710 = vmatprep.subr.mxu0 0.0
    %1711 = vmatpush1.msra.mxu0 0.0
    %1712 = vmatprep.subr.mxu0 0.0
    %1713 = vmatpush1.msra.mxu0 0.0
    %1714 = vmatprep.subr.mxu0 0.0
    %1715 = vmatpush1.msra.mxu0 0.0
    %1716 = vmatprep.subr.mxu0 0.0
    %1717 = vmatpush1.msra.mxu0 0.0
    %1718 = vmatprep.subr.mxu0 0.0
    %1719 = vmatpush1.msra.mxu0 0.0
    %1720 = vmatprep.subr.mxu0 0.0
    %1721 = vmatpush1.msra.mxu0 0.0
    %1722 = vmatprep.subr.mxu0 0.0
    %1723 = vmatpush1.msra.mxu0 0.0
    %1724 = vmatprep.subr.mxu0 0.0
    %1725 = vmatpush1.msra.mxu0 0.0
    %1726 = vmatprep.subr.mxu0 0.0
    %1727 = vmatpush1.msra.mxu0 0.0
    %1728 = vmatprep.subr.mxu0 0.0
    %1729 = vmatpush1.msra.mxu0 0.0
    %1730 = vmatprep.subr.mxu0 0.0
    %1731 = vmatpush1.msra.mxu0 0.0
    %1732 = vmatprep.subr.mxu0 0.0
    %1733 = vmatpush1.msra.mxu0 0.0
    %1734 = vmatprep.subr.mxu0 0.0
    %1735 = vmatpush1.msra.mxu0 0.0
    %1736 = vmatprep.subr.mxu0 0.0
    %1737 = vmatpush1.msra.mxu0 0.0
    %1738 = vmatprep.subr.mxu0 0.0
    %1739 = vmatpush1.msra.mxu0 0.0
    %1740 = vmatprep.subr.mxu0 0.0
    %1741 = vmatpush1.msra.mxu0 0.0
    %1742 = vmatprep.mubr.f32.mxu0 0.0
    %1743 = vmatmul.mubr.f32.gmra.mrb[0].mxu0 %v1531
    %v1744 = vpop.f32.mrb[0].mxu0
    %v1745 = vadd.f32 0.0, %v1744
    %v1746 = vpop.f32.mrb[0].mxu0
    %1747 = vdwg.mxu0
    %v1749 = vrot.slane %v1745, 1
    %1750 = vrot.lane.b32.xlu0 %v1749, 64
    %v1751 = vpop.permute.xlu0 %1750
    %v1753 = vadd.f32 %v45, %v1751
    %v1754 = vtanh.pop %v1753
    %v1756 = vrot.slane %v1754, 7
    %1757 = vrot.lane.b32.xlu0 %v1756, 64
    %v1758 = vpop.permute.xlu0 %1757
    %v1759 = vsel %vm48, %v1758, 0
    %1761 = vmatprep.subr.mxu0 0.0
    %1762 = vmatpush1.msra.mxu0 %v136
    %1763 = vmatprep.subr.mxu0 0.0
    %1764 = vmatpush1.msra.mxu0 %v138
    %1765 = vmatprep.subr.mxu0 0.0
    %1766 = vmatpush1.msra.mxu0 %v140
    %1767 = vmatprep.subr.mxu0 0.0
    %1768 = vmatpush1.msra.mxu0 %v142
    %1769 = vmatprep.subr.mxu0 0.0
    %1770 = vmatpush1.msra.mxu0 0.0
    %1771 = vmatprep.subr.mxu0 0.0
    %1772 = vmatpush1.msra.mxu0 0.0
    %1773 = vmatprep.subr.mxu0 0.0
    %1774 = vmatpush1.msra.mxu0 0.0
    %1775 = vmatprep.subr.mxu0 0.0
    %1776 = vmatpush1.msra.mxu0 0.0
    %1777 = vmatprep.subr.mxu0 0.0
    %1778 = vmatpush1.msra.mxu0 0.0
    %1779 = vmatprep.subr.mxu0 0.0
    %1780 = vmatpush1.msra.mxu0 0.0
    %1781 = vmatprep.subr.mxu0 0.0
    %1782 = vmatpush1.msra.mxu0 0.0
    %1783 = vmatprep.subr.mxu0 0.0
    %1784 = vmatpush1.msra.mxu0 0.0
    %1785 = vmatprep.subr.mxu0 0.0
    %1786 = vmatpush1.msra.mxu0 0.0
    %1787 = vmatprep.subr.mxu0 0.0
    %1788 = vmatpush1.msra.mxu0 0.0
    %1789 = vmatprep.subr.mxu0 0.0
    %1790 = vmatpush1.msra.mxu0 0.0
    %1791 = vmatprep.subr.mxu0 0.0
    %1792 = vmatpush1.msra.mxu0 0.0
    %1793 = vmatprep.subr.mxu0 0.0
    %1794 = vmatpush1.msra.mxu0 0.0
    %1795 = vmatprep.subr.mxu0 0.0
    %1796 = vmatpush1.msra.mxu0 0.0
    %1797 = vmatprep.subr.mxu0 0.0
    %1798 = vmatpush1.msra.mxu0 0.0
    %1799 = vmatprep.subr.mxu0 0.0
    %1800 = vmatpush1.msra.mxu0 0.0
    %1801 = vmatprep.subr.mxu0 0.0
    %1802 = vmatpush1.msra.mxu0 0.0
    %1803 = vmatprep.subr.mxu0 0.0
    %1804 = vmatpush1.msra.mxu0 0.0
    %1805 = vmatprep.subr.mxu0 0.0
    %1806 = vmatpush1.msra.mxu0 0.0
    %1807 = vmatprep.subr.mxu0 0.0
    %1808 = vmatpush1.msra.mxu0 0.0
    %1809 = vmatprep.subr.mxu0 0.0
    %1810 = vmatpush1.msra.mxu0 0.0
    %1811 = vmatprep.subr.mxu0 0.0
    %1812 = vmatpush1.msra.mxu0 0.0
    %1813 = vmatprep.subr.mxu0 0.0
    %1814 = vmatpush1.msra.mxu0 0.0
    %1815 = vmatprep.subr.mxu0 0.0
    %1816 = vmatpush1.msra.mxu0 0.0
    %1817 = vmatprep.subr.mxu0 0.0
    %1818 = vmatpush1.msra.mxu0 0.0
    %1819 = vmatprep.subr.mxu0 0.0
    %1820 = vmatpush1.msra.mxu0 0.0
    %1821 = vmatprep.subr.mxu0 0.0
    %1822 = vmatpush1.msra.mxu0 0.0
    %1823 = vmatprep.subr.mxu0 0.0
    %1824 = vmatpush1.msra.mxu0 0.0
    %1825 = vmatprep.mubr.f32.mxu0 0.0
    %1826 = vmatmul.mubr.f32.gmra.mrb[0].mxu0 %v1759
    %v1827 = vpop.f32.mrb[0].mxu0
    %v1828 = vadd.f32 %v149, %v1827
    %v1829 = vpop.f32.mrb[0].mxu0
    %1830 = vdwg.mxu0
    %v1832 = vsel %vm48, %v1677, 0
    %1834 = vmatprep.subr.mxu0 0.0
    %1835 = vmatpush1.msra.mxu0 %v224
    %1836 = vmatprep.subr.mxu0 0.0
    %1837 = vmatpush1.msra.mxu0 %v226
    %1838 = vmatprep.subr.mxu0 0.0
    %1839 = vmatpush1.msra.mxu0 %v228
    %1840 = vmatprep.subr.mxu0 0.0
    %1841 = vmatpush1.msra.mxu0 %v230
    %1842 = vmatprep.subr.mxu0 0.0
    %1843 = vmatpush1.msra.mxu0 0.0
    %1844 = vmatprep.subr.mxu0 0.0
    %1845 = vmatpush1.msra.mxu0 0.0
    %1846 = vmatprep.subr.mxu0 0.0
    %1847 = vmatpush1.msra.mxu0 0.0
    %1848 = vmatprep.subr.mxu0 0.0
    %1849 = vmatpush1.msra.mxu0 0.0
    %1850 = vmatprep.subr.mxu0 0.0
    %1851 = vmatpush1.msra.mxu0 0.0
    %1852 = vmatprep.subr.mxu0 0.0
    %1853 = vmatpush1.msra.mxu0 0.0
    %1854 = vmatprep.subr.mxu0 0.0
    %1855 = vmatpush1.msra.mxu0 0.0
    %1856 = vmatprep.subr.mxu0 0.0
    %1857 = vmatpush1.msra.mxu0 0.0
    %1858 = vmatprep.subr.mxu0 0.0
    %1859 = vmatpush1.msra.mxu0 0.0
    %1860 = vmatprep.subr.mxu0 0.0
    %1861 = vmatpush1.msra.mxu0 0.0
    %1862 = vmatprep.subr.mxu0 0.0
    %1863 = vmatpush1.msra.mxu0 0.0
    %1864 = vmatprep.subr.mxu0 0.0
    %1865 = vmatpush1.msra.mxu0 0.0
    %1866 = vmatprep.subr.mxu0 0.0
    %1867 = vmatpush1.msra.mxu0 0.0
    %1868 = vmatprep.subr.mxu0 0.0
    %1869 = vmatpush1.msra.mxu0 0.0
    %1870 = vmatprep.subr.mxu0 0.0
    %1871 = vmatpush1.msra.mxu0 0.0
    %1872 = vmatprep.subr.mxu0 0.0
    %1873 = vmatpush1.msra.mxu0 0.0
    %1874 = vmatprep.subr.mxu0 0.0
    %1875 = vmatpush1.msra.mxu0 0.0
    %1876 = vmatprep.subr.mxu0 0.0
    %1877 = vmatpush1.msra.mxu0 0.0
    %1878 = vmatprep.subr.mxu0 0.0
    %1879 = vmatpush1.msra.mxu0 0.0
    %1880 = vmatprep.subr.mxu0 0.0
    %1881 = vmatpush1.msra.mxu0 0.0
    %1882 = vmatprep.subr.mxu0 0.0
    %1883 = vmatpush1.msra.mxu0 0.0
    %1884 = vmatprep.subr.mxu0 0.0
    %1885 = vmatpush1.msra.mxu0 0.0
    %1886 = vmatprep.subr.mxu0 0.0
    %1887 = vmatpush1.msra.mxu0 0.0
    %1888 = vmatprep.subr.mxu0 0.0
    %1889 = vmatpush1.msra.mxu0 0.0
    %1890 = vmatprep.subr.mxu0 0.0
    %1891 = vmatpush1.msra.mxu0 0.0
    %1892 = vmatprep.subr.mxu0 0.0
    %1893 = vmatpush1.msra.mxu0 0.0
    %1894 = vmatprep.subr.mxu0 0.0
    %1895 = vmatpush1.msra.mxu0 0.0
    %1896 = vmatprep.subr.mxu0 0.0
    %1897 = vmatpush1.msra.mxu0 0.0
    %1898 = vmatprep.mubr.f32.mxu0 0.0
    %1899 = vmatmul.mubr.f32.gmra.mrb[0].mxu0 %v1832
    %v1900 = vpop.f32.mrb[0].mxu0
    %v1901 = vadd.f32 0.0, %v1900
    %v1902 = vpop.f32.mrb[0].mxu0
    %1903 = vdwg.mxu0
    %v1904 = vadd.f32 %v1828, %v1901
    %v1905 = vtanh.pop %v1904
    %v1906 = vrot.slane %v537, 7
    %v1908 = vrot.slane %v765, 6
    %v1910 = vrot.slane %v993, 5
    %v1912 = vrot.slane %v1221, 4
    %v1914 = vrot.slane %v1449, 3
    %v1916 = vrot.slane %v1677, 2
    %v1919 = vrot.slane %v1905, 1
    %vm1921 = vcmask 1040384
    %v1922 = vsel %vm1921, %v309, %v1906
    %vm1923 = vcmask 1041408
    %v1924 = vsel %vm1923, %v1922, %v1908
    %vm1925 = vcmask 1042432
    %v1926 = vsel %vm1925, %v1924, %v1910
    %vm1927 = vcmask 1043456
    %v1928 = vsel %vm1927, %v1926, %v1912
    %vm1929 = vcmask 1044480
    %v1930 = vsel %vm1929, %v1928, %v1914
    %vm1931 = vcmask 1045504
    %v1932 = vsel %vm1931, %v1930, %v1916
    %vm1933 = vcmask 1046528
    %v1934 = vsel %vm1933, %v1932, %v1919
    %v1935 = vlaneseq
    %v1936 = vshrl.u32 %v1935, 7
    %v1937 = vsub.s32 0, %v1936
    %v1938 = vrot.slane %v19, %v1937
    %1939 = vrot.lane.b32.xlu0 %v14, 32
    %v1940 = vpop.permute.xlu0 %1939
    %1941 = vrot.lane.b32.xlu0 %v15, 32
    %v1942 = vpop.permute.xlu0 %1941
    %1943 = vrot.lane.b32.xlu0 %v16, 32
    %v1944 = vpop.permute.xlu0 %1943
    %1945 = vrot.lane.b32.xlu0 %v17, 32
    %v1946 = vpop.permute.xlu0 %1945
    %v1952 = vsel %vm48, %v1934, 0
    %1954 = vmatprep.subr.mxu0 0.0
    %1955 = vmatpush1.msra.mxu0 %v1940
    %1956 = vmatprep.subr.mxu0 0.0
    %1957 = vmatpush1.msra.mxu0 %v1942
    %1958 = vmatprep.subr.mxu0 0.0
    %1959 = vmatpush1.msra.mxu0 %v1944
    %1960 = vmatprep.subr.mxu0 0.0
    %1961 = vmatpush1.msra.mxu0 %v1946
    %1962 = vmatprep.subr.mxu0 0.0
    %1963 = vmatpush1.msra.mxu0 0.0
    %1964 = vmatprep.subr.mxu0 0.0
    %1965 = vmatpush1.msra.mxu0 0.0
    %1966 = vmatprep.subr.mxu0 0.0
    %1967 = vmatpush1.msra.mxu0 0.0
    %1968 = vmatprep.subr.mxu0 0.0
    %1969 = vmatpush1.msra.mxu0 0.0
    %1970 = vmatprep.subr.mxu0 0.0
    %1971 = vmatpush1.msra.mxu0 0.0
    %1972 = vmatprep.subr.mxu0 0.0
    %1973 = vmatpush1.msra.mxu0 0.0
    %1974 = vmatprep.subr.mxu0 0.0
    %1975 = vmatpush1.msra.mxu0 0.0
    %1976 = vmatprep.subr.mxu0 0.0
    %1977 = vmatpush1.msra.mxu0 0.0
    %1978 = vmatprep.subr.mxu0 0.0
    %1979 = vmatpush1.msra.mxu0 0.0
    %1980 = vmatprep.subr.mxu0 0.0
    %1981 = vmatpush1.msra.mxu0 0.0
    %1982 = vmatprep.subr.mxu0 0.0
    %1983 = vmatpush1.msra.mxu0 0.0
    %1984 = vmatprep.subr.mxu0 0.0
    %1985 = vmatpush1.msra.mxu0 0.0
    %1986 = vmatprep.subr.mxu0 0.0
    %1987 = vmatpush1.msra.mxu0 0.0
    %1988 = vmatprep.subr.mxu0 0.0
    %1989 = vmatpush1.msra.mxu0 0.0
    %1990 = vmatprep.subr.mxu0 0.0
    %1991 = vmatpush1.msra.mxu0 0.0
    %1992 = vmatprep.subr.mxu0 0.0
    %1993 = vmatpush1.msra.mxu0 0.0
    %1994 = vmatprep.subr.mxu0 0.0
    %1995 = vmatpush1.msra.mxu0 0.0
    %1996 = vmatprep.subr.mxu0 0.0
    %1997 = vmatpush1.msra.mxu0 0.0
    %1998 = vmatprep.subr.mxu0 0.0
    %1999 = vmatpush1.msra.mxu0 0.0
    %2000 = vmatprep.subr.mxu0 0.0
    %2001 = vmatpush1.msra.mxu0 0.0
    %2002 = vmatprep.subr.mxu0 0.0
    %2003 = vmatpush1.msra.mxu0 0.0
    %2004 = vmatprep.subr.mxu0 0.0
    %2005 = vmatpush1.msra.mxu0 0.0
    %2006 = vmatprep.subr.mxu0 0.0
    %2007 = vmatpush1.msra.mxu0 0.0
    %2008 = vmatprep.subr.mxu0 0.0
    %2009 = vmatpush1.msra.mxu0 0.0
    %2010 = vmatprep.subr.mxu0 0.0
    %2011 = vmatpush1.msra.mxu0 0.0
    %2012 = vmatprep.subr.mxu0 0.0
    %2013 = vmatpush1.msra.mxu0 0.0
    %2014 = vmatprep.subr.mxu0 0.0
    %2015 = vmatpush1.msra.mxu0 0.0
    %2016 = vmatprep.subr.mxu0 0.0
    %2017 = vmatpush1.msra.mxu0 0.0
    %2018 = vmatprep.mubr.f32.mxu0 0.0
    %2019 = vmatmul.mubr.f32.gmra.mrb[0].mxu0 %v1952
    %v2020 = vpop.f32.mrb[0].mxu0
    %v2021 = vadd.f32 %v1938, %v2020
    %v2022 = vpop.f32.mrb[0].mxu0
    %2023 = vdwg.mxu0
    %v2024 = vmax.f32 %v2021, 0.0
    %2026 = vrot.lane.b32.xlu0 %v1938, 96
    %v2027 = vpop.permute.xlu0 %2026
    %v2029 = vmul.f32 %v2024, %v2027
    %v2030 = vsel %vm48, %v2029, 0.0
    %2031 = vadd.xlane.f32.xlu0 %v2030
    %v2032 = vpop.xlane.xlu0 %2031
    %v2033 = vadd.f32 %v2032, %v1938
    %2035 = vrot.lane.b32.xlu0 %v2033, 64
    %v2036 = vpop.permute.xlu0 %2035
    %vm2038 = vcmask 7168
    %2039 = vst.msk [vmem:[%s2] sm:$0xff] %vm2038, %v2036
    %2040 = vrot.lane.b32.xlu0 %v1754, 64
    %v2041 = vpop.permute.xlu0 %2040
    %vm2043 = vcmask 261127
    %2044 = vst.msk [vmem:[#allocation2 - $0x7] sm:$0x80] %vm2043, %v2041
    %vm2045 = vcmask 253952
    %2046 = vst.msk [vmem:[#allocation2 + $0x1] sm:$0x1] %vm2045, %v1905
    // Predicated region
    $region10: #{recurrent_policy_forward.1} parent=1 // pred_check
      _
    $region11: #{recurrent_policy_forward.1} parent=1 // pred_check_branch
      %2048 = sbr.rel (0) target = $region13
    $region12: #{recurrent_policy_forward.1} parent=1 // pred_region
      _
    $region13: #{recurrent_policy_forward.1} parent=1 // pred_fallthru
      _
    // Predicated region
    $region14: #{recurrent_policy_forward.1} parent=1 // pred_check
      _
    $region15: #{recurrent_policy_forward.1} parent=1 // pred_check_branch
      %2050 = sbr.rel (0) target = $region17
    $region16: #{recurrent_policy_forward.1} parent=1 // pred_region
      %s2052 = ssub.s32 32, 32
      %2053 = vsyncadd [#allocation3], %s2052
      %s2055 = sshll.u32 [#allocation2], 4
      %s2056 = int_to_ptr.vmem [resolvable:$true] %s2055
      %2058 = dma.vmem_to_hbm [thread:$0]  %s2056, 32, %s3, [#allocation3]
    $region17: #{recurrent_policy_forward.1} parent=1 // pred_fallthru
      _
    // Predicated region
    $region18: #{recurrent_policy_forward.1} parent=1 // pred_check
      _
    $region19: #{recurrent_policy_forward.1} parent=1 // pred_check_branch
      %2060 = sbr.rel (0) target = $region21
    $region20: #{recurrent_policy_forward.1} parent=1 // pred_region
      _
    $region21: #{recurrent_policy_forward.1} parent=1 // pred_fallthru
      _
    // Predicated region
    $region22: #{recurrent_policy_forward.1} parent=1 // pred_check
      _
    $region23: #{recurrent_policy_forward.1} parent=1 // pred_check_branch
      %2062 = sbr.rel (0) target = $region25
    $region24: #{recurrent_policy_forward.1} parent=1 // pred_region
      %2063 = dma.done [#allocation3], 32
    $region25: #{recurrent_policy_forward.1} parent=1 // pred_fallthru
      _
    %2064 = vsyncpa [#allocation3], 1

</llo_original>
